<compile_context>
chip_gen: v5e
topology: v5e:2x2
jax: 0.10.0
libtpu: 0.0.40
codegen_flags: <defaults>
</compile_context>

<pallas_src>
import jax
import jax.numpy as jnp
from jax.experimental import pallas as pl
from jax.experimental.pallas import tpu as pltpu

# ----------------------------- model dimensions ------------------------------
B, S, H = 2, 8, 32          # batch, seq, hidden
NH, HD = 2, 16              # heads, head dim (NH * HD == H)
FF = 64                     # FFN inner dim
VOCAB = 50
NUM_CLASSES = 4
NUM_LAYERS = 2
EPS = 1e-5


# ------------------------------ in-kernel helpers ----------------------------
def _layernorm(x, gamma, beta):
    mu = jnp.mean(x, axis=-1, keepdims=True)
    var = jnp.mean((x - mu) ** 2, axis=-1, keepdims=True)
    return (x - mu) * jax.lax.rsqrt(var + EPS) * gamma + beta


def _gelu(x):
    # TODO(synk): tanh-approx GELU; PyTorch nn.GELU default is the exact erf form.
    c = 0.7978845608028654  # sqrt(2/pi)
    return 0.5 * x * (1.0 + jnp.tanh(c * (x + 0.044715 * x * x * x)))


# --------------------------------- fused kernel -------------------------------
def fused_forward_kernel(emb_ref, mask_ref, emb_g_ref, emb_b_ref,
                         wqkv_ref, bqkv_ref, wo_ref, bo_ref,
                         g1_ref, be1_ref, w1_ref, b1_ref,
                         w2_ref, b2_ref, g2_ref, be2_ref,
                         fcw_ref, fcb_ref,
                         hid_ref, logits_ref,
                         ctx_scratch):
    f32 = jnp.float32
    scale = 1.0 / (HD ** 0.5)

    # ---- embedding layernorm (whole batch as one (B*S, H) block) ----
    x = _layernorm(emb_ref[...].reshape(B * S, H), emb_g_ref[0], emb_b_ref[0])
    hid_ref[0] = x.reshape(B, S, H)

    # ---- additive attention-mask bias, built in-kernel from the (B, S) mask ----
    bias = jnp.broadcast_to(((1.0 - mask_ref[...]) * -1e9)[:, None, :], (B, S, S))

    # ---- encoder layers (unrolled; per-layer params stacked on leading axis) ----
    for li in range(NUM_LAYERS):
        # fused QKV projection: one (B*S, H) @ (H, 3H) matmul
        qkv = jnp.dot(x, wqkv_ref[li], preferred_element_type=f32) + bqkv_ref[li]
        q = qkv[:, 0 * H:1 * H].reshape(B, S, H)
        k = qkv[:, 1 * H:2 * H].reshape(B, S, H)
        v = qkv[:, 2 * H:3 * H].reshape(B, S, H)

        for h in range(NH):
            sl = slice(h * HD, (h + 1) * HD)
            qh, kh, vh = q[..., sl], k[..., sl], v[..., sl]
            # scores via einsum: contraction expressed directly, no K^T materialized
            s = jnp.einsum('bqd,bkd->bqk', qh, kh,
                           preferred_element_type=f32) * scale + bias
            s = s - jnp.max(s, axis=-1, keepdims=True)
            p = jnp.exp(s)
            p = p * pl.reciprocal(jnp.sum(p, axis=-1, keepdims=True), approx=True)
            ctx_h = jnp.einsum('bqk,bkd->bqd', p, vh, preferred_element_type=f32)
            ctx_scratch[:, sl] = ctx_h.reshape(B * S, HD)

        # single output projection over all heads
        attn = jnp.dot(ctx_scratch[...], wo_ref[li],
                       preferred_element_type=f32) + bo_ref[li]
        h1 = _layernorm(x + attn, g1_ref[li], be1_ref[li])

        ff = _gelu(jnp.dot(h1, w1_ref[li], preferred_element_type=f32) + b1_ref[li])
        ff = jnp.dot(ff, w2_ref[li], preferred_element_type=f32) + b2_ref[li]
        x = _layernorm(h1 + ff, g2_ref[li], be2_ref[li])

        hid_ref[li + 1] = x.reshape(B, S, H)

    # ---- classifier on last_hidden_state.flatten(1) ----
    # flat @ fc_w == sum_s last[:, s, :] @ fc_w[s*H:(s+1)*H, :]
    logits = jnp.zeros((B, NUM_CLASSES), f32) + fcb_ref[0]
    for si in range(S):
        rows = hid_ref[NUM_LAYERS, :, si, :]                  # (B, H)
        logits = logits + jnp.dot(rows, fcw_ref[si], preferred_element_type=f32)
    logits_ref[...] = logits


# ------------------------------ kernel wrapper --------------------------------
def fused_forward(emb, mask, kp):
    # Single pallas_call, no grid: every operand fits in VMEM (total ~100 KB).
    return pl.pallas_call(
        fused_forward_kernel,
        out_shape=(jax.ShapeDtypeStruct((NUM_LAYERS + 1, B, S, H), jnp.float32),
                   jax.ShapeDtypeStruct((B, NUM_CLASSES), jnp.float32)),
        scratch_shapes=[pltpu.VMEM((B * S, H), jnp.float32)],
    )(emb, mask,
      kp["emb_g"], kp["emb_b"],
      kp["wqkv"], kp["bqkv"], kp["wo"], kp["bo"],
      kp["g1"], kp["be1"], kp["w1"], kp["b1"],
      kp["w2"], kp["b2"], kp["g2"], kp["be2"],
      kp["fcw"], kp["fcb"])


# ----------------------------- parameter creation -----------------------------
def init_params(key):
    def nrm(k, shape, scale=0.02):
        return (scale * jax.random.normal(k, shape)).astype(jnp.float32)

    keys = jax.random.split(key, 4 + NUM_LAYERS)
    params = {
        "word_emb": nrm(keys[0], (VOCAB, H)),
        "pos_emb": nrm(keys[1], (S, H)),
        "emb_g": jnp.ones((1, H), jnp.float32),
        "emb_b": jnp.zeros((1, H), jnp.float32),
        "fc_w": nrm(keys[2], (S * H, NUM_CLASSES)),
        "fc_b": jnp.zeros((1, NUM_CLASSES), jnp.float32),
        "layers": [],
    }
    for li in range(NUM_LAYERS):
        lk = jax.random.split(keys[4 + li], 6)
        params["layers"].append({
            "wq": nrm(lk[0], (H, H)), "bq": jnp.zeros((H,), jnp.float32),
            "wk": nrm(lk[1], (H, H)), "bk": jnp.zeros((H,), jnp.float32),
            "wv": nrm(lk[2], (H, H)), "bv": jnp.zeros((H,), jnp.float32),
            "wo": nrm(lk[3], (H, H)), "bo": jnp.zeros((H,), jnp.float32),
            "g1": jnp.ones((H,), jnp.float32), "be1": jnp.zeros((H,), jnp.float32),
            "w1": nrm(lk[4], (H, FF)), "b1": jnp.zeros((FF,), jnp.float32),
            "w2": nrm(lk[5], (FF, H)), "b2": jnp.zeros((H,), jnp.float32),
            "g2": jnp.ones((H,), jnp.float32), "be2": jnp.zeros((H,), jnp.float32),
        })
    return params


def pack_params(params):
    """Stack per-layer params on a leading NUM_LAYERS axis, fuse QKV, reshape fc."""
    layers = params["layers"]
    stack = lambda name: jnp.stack([lp[name] for lp in layers], axis=0)
    return {
        "emb_g": params["emb_g"], "emb_b": params["emb_b"],
        "wqkv": jnp.stack([jnp.concatenate([lp["wq"], lp["wk"], lp["wv"]], axis=1)
                           for lp in layers], axis=0),          # (L, H, 3H)
        "bqkv": jnp.stack([jnp.concatenate([lp["bq"], lp["bk"], lp["bv"]], axis=0)
                           for lp in layers], axis=0),          # (L, 3H)
        "wo": stack("wo"), "bo": stack("bo"),
        "g1": stack("g1"), "be1": stack("be1"),
        "w1": stack("w1"), "b1": stack("b1"),
        "w2": stack("w2"), "b2": stack("b2"),
        "g2": stack("g2"), "be2": stack("be2"),
        "fcw": params["fc_w"].reshape(S, H, NUM_CLASSES),       # (S, H, C)
        "fcb": params["fc_b"],                                  # (1, C)
    }


# ------------------------------- forward pass ---------------------------------
def declutr_classifier_forward(params, x, return_feat=False):
    # mirrors: feature = self.model(input_ids=x[0], attention_mask=x[2])
    input_ids, attention_mask = x[0], x[2]

    # Embedding lookup is glue (gather); everything downstream is one fused kernel.
    emb = (params["word_emb"][input_ids] + params["pos_emb"][None, :, :]).astype(jnp.float32)
    kp = pack_params(params)

    hid, out = fused_forward(emb, attention_mask.astype(jnp.float32), kp)

    if return_feat:
        hidden_states = tuple(hid[i] for i in range(NUM_LAYERS + 1))
        flat = hid[NUM_LAYERS].reshape(B, S * H)    # last_hidden_state.flatten(1)
        return out, hidden_states, flat
    return out


# ----------------------------------- main --------------------------------------
if __name__ == "__main__":
    key = jax.random.PRNGKey(0)
    pkey, ikey = jax.random.split(key)
    params = init_params(pkey)

    input_ids = jax.random.randint(ikey, (B, S), 0, VOCAB, dtype=jnp.int32)
    attention_mask = jnp.array([[1, 1, 1, 1, 1, 1, 1, 1],
                                [1, 1, 1, 1, 1, 1, 0, 0]], dtype=jnp.float32)
    token_type_ids = jnp.zeros((B, S), dtype=jnp.int32)  # x[1] (unused by forward)
    x = (input_ids, token_type_ids, attention_mask)

    out, hidden_states, feat = declutr_classifier_forward(params, x, return_feat=True)
    out = jax.block_until_ready(out)
    jax.block_until_ready(feat)

    assert out.shape == (B, NUM_CLASSES)
    assert feat.shape == (B, S * H)
    assert len(hidden_states) == NUM_LAYERS + 1
    print("KERNEL_OK")
</pallas_src>

<mosaic_0001>
module attributes {stable_mosaic.version = 11 : i64} {
  func.func @fused_forward_kernel(%arg0: memref<2x8x32xf32, #tpu.memory_space<vmem>>, %arg1: memref<2x8xf32, #tpu.memory_space<vmem>>, %arg2: memref<1x32xf32, #tpu.memory_space<vmem>>, %arg3: memref<1x32xf32, #tpu.memory_space<vmem>>, %arg4: memref<2x32x96xf32, #tpu.memory_space<vmem>>, %arg5: memref<2x96xf32, #tpu.memory_space<vmem>>, %arg6: memref<2x32x32xf32, #tpu.memory_space<vmem>>, %arg7: memref<2x32xf32, #tpu.memory_space<vmem>>, %arg8: memref<2x32xf32, #tpu.memory_space<vmem>>, %arg9: memref<2x32xf32, #tpu.memory_space<vmem>>, %arg10: memref<2x32x64xf32, #tpu.memory_space<vmem>>, %arg11: memref<2x64xf32, #tpu.memory_space<vmem>>, %arg12: memref<2x64x32xf32, #tpu.memory_space<vmem>>, %arg13: memref<2x32xf32, #tpu.memory_space<vmem>>, %arg14: memref<2x32xf32, #tpu.memory_space<vmem>>, %arg15: memref<2x32xf32, #tpu.memory_space<vmem>>, %arg16: memref<8x32x4xf32, #tpu.memory_space<vmem>>, %arg17: memref<1x4xf32, #tpu.memory_space<vmem>>, %arg18: memref<3x2x8x32xf32, #tpu.memory_space<vmem>>, %arg19: memref<2x4xf32, #tpu.memory_space<vmem>>, %arg20: memref<16x32xf32, #tpu.memory_space<vmem>>) attributes {dimension_semantics = [], scalar_prefetch = 0 : i64, scratch_operands = 1 : i64, tpu.core_type = #tpu.core_type<tc>} {
    %c0 = arith.constant 0 : index
    %c0_0 = arith.constant 0 : index
    %c0_1 = arith.constant 0 : index
    %0 = vector.load %arg0[%c0, %c0_0, %c0_1] : memref<2x8x32xf32, #tpu.memory_space<vmem>>, vector<2x8x32xf32>
    %1 = vector.shape_cast %0 : vector<2x8x32xf32> to vector<16x32xf32>
    %c0_2 = arith.constant 0 : index
    %c0_3 = arith.constant 0 : index
    %2 = vector.load %arg2[%c0_2, %c0_3] : memref<1x32xf32, #tpu.memory_space<vmem>>, vector<1x32xf32>
    %3 = vector.shape_cast %2 : vector<1x32xf32> to vector<32xf32>
    %c0_4 = arith.constant 0 : index
    %c0_5 = arith.constant 0 : index
    %4 = vector.load %arg3[%c0_4, %c0_5] : memref<1x32xf32, #tpu.memory_space<vmem>>, vector<1x32xf32>
    %5 = vector.shape_cast %4 : vector<1x32xf32> to vector<32xf32>
    %cst = arith.constant dense<0.000000e+00> : vector<16xf32>
    %6 = vector.multi_reduction <add>, %1, %cst [1] : vector<16x32xf32> to vector<16xf32>
    %7 = vector.shape_cast %6 : vector<16xf32> to vector<16x1xf32>
    %cst_6 = arith.constant 3.200000e+01 : f32
    %8 = vector.broadcast %cst_6 : f32 to vector<16x1xf32>
    %9 = arith.divf %7, %8 : vector<16x1xf32>
    %10 = vector.broadcast %9 : vector<16x1xf32> to vector<16x32xf32>
    %11 = arith.subf %1, %10 : vector<16x32xf32>
    %12 = arith.mulf %11, %11 : vector<16x32xf32>
    %cst_7 = arith.constant dense<0.000000e+00> : vector<16xf32>
    %13 = vector.multi_reduction <add>, %12, %cst_7 [1] : vector<16x32xf32> to vector<16xf32>
    %14 = vector.shape_cast %13 : vector<16xf32> to vector<16x1xf32>
    %cst_8 = arith.constant 3.200000e+01 : f32
    %15 = vector.broadcast %cst_8 : f32 to vector<16x1xf32>
    %16 = arith.divf %14, %15 : vector<16x1xf32>
    %17 = vector.broadcast %9 : vector<16x1xf32> to vector<16x32xf32>
    %18 = arith.subf %1, %17 : vector<16x32xf32>
    %cst_9 = arith.constant 9.99999974E-6 : f32
    %19 = vector.broadcast %cst_9 : f32 to vector<16x1xf32>
    %20 = arith.addf %16, %19 : vector<16x1xf32>
    %21 = math.rsqrt %20 : vector<16x1xf32>
    %22 = vector.broadcast %21 : vector<16x1xf32> to vector<16x32xf32>
    %23 = arith.mulf %18, %22 : vector<16x32xf32>
    %24 = vector.shape_cast %3 : vector<32xf32> to vector<1x32xf32>
    %25 = vector.broadcast %24 : vector<1x32xf32> to vector<16x32xf32>
    %26 = arith.mulf %23, %25 : vector<16x32xf32>
    %27 = vector.shape_cast %5 : vector<32xf32> to vector<1x32xf32>
    %28 = vector.broadcast %27 : vector<1x32xf32> to vector<16x32xf32>
    %29 = arith.addf %26, %28 : vector<16x32xf32>
    %30 = vector.shape_cast %29 : vector<16x32xf32> to vector<2x8x32xf32>
    %c0_10 = arith.constant 0 : index
    %c0_11 = arith.constant 0 : index
    %c0_12 = arith.constant 0 : index
    %c0_13 = arith.constant 0 : index
    %31 = vector.load %arg18[%c0_10, %c0_11, %c0_12, %c0_13] : memref<3x2x8x32xf32, #tpu.memory_space<vmem>>, vector<1x2x8x32xf32>
    %32 = vector.shape_cast %31 : vector<1x2x8x32xf32> to vector<2x8x32xf32>
    %33 = vector.shape_cast %30 : vector<2x8x32xf32> to vector<1x2x8x32xf32>
    tpu.vector_store %arg18[%c0_10, %c0_11, %c0_12, %c0_13], %33 {strides = array<i32>} : memref<3x2x8x32xf32, #tpu.memory_space<vmem>>, vector<1x2x8x32xf32>,
    %c0_14 = arith.constant 0 : index
    %c0_15 = arith.constant 0 : index
    %34 = vector.load %arg1[%c0_14, %c0_15] : memref<2x8xf32, #tpu.memory_space<vmem>>, vector<2x8xf32>
    %cst_16 = arith.constant 1.000000e+00 : f32
    %35 = vector.broadcast %cst_16 : f32 to vector<2x8xf32>
    %36 = arith.subf %35, %34 : vector<2x8xf32>
    %cst_17 = arith.constant -1.000000e+09 : f32
    %37 = vector.broadcast %cst_17 : f32 to vector<2x8xf32>
    %38 = arith.mulf %36, %37 : vector<2x8xf32>
    %39 = vector.shape_cast %38 : vector<2x8xf32> to vector<2x1x8xf32>
    %40 = vector.shape_cast %39 : vector<2x1x8xf32> to vector<2x1x8xf32>
    %41 = vector.broadcast %40 : vector<2x1x8xf32> to vector<2x8x8xf32>
    %c0_18 = arith.constant 0 : index
    %c0_19 = arith.constant 0 : index
    %c0_20 = arith.constant 0 : index
    %42 = vector.load %arg4[%c0_18, %c0_19, %c0_20] : memref<2x32x96xf32, #tpu.memory_space<vmem>>, vector<1x32x96xf32>
    %43 = vector.shape_cast %42 : vector<1x32x96xf32> to vector<32x96xf32>
    %cst_21 = arith.constant dense<0.000000e+00> : vector<16x96xf32>
    %44 = tpu.matmul %29, %43, %cst_21 {dimension_numbers = #tpu.dot_dimension_numbers<[1], [0], [0], [1], [0, 0, 1, 1], [], []>} : vector<16x32xf32>, vector<32x96xf32>, vector<16x96xf32> -> vector<16x96xf32>
    %c0_22 = arith.constant 0 : index
    %c0_23 = arith.constant 0 : index
    %45 = vector.load %arg5[%c0_22, %c0_23] : memref<2x96xf32, #tpu.memory_space<vmem>>, vector<1x96xf32>
    %46 = vector.shape_cast %45 : vector<1x96xf32> to vector<96xf32>
    %47 = vector.shape_cast %46 : vector<96xf32> to vector<1x96xf32>
    %48 = vector.broadcast %47 : vector<1x96xf32> to vector<16x96xf32>
    %49 = arith.addf %44, %48 : vector<16x96xf32>
    %50 = vector.extract_strided_slice %49 {offsets = [0, 0], sizes = [16, 32], strides = [1, 1]} : vector<16x96xf32> to vector<16x32xf32>
    %51 = vector.shape_cast %50 : vector<16x32xf32> to vector<2x8x32xf32>
    %52 = vector.extract_strided_slice %49 {offsets = [0, 32], sizes = [16, 32], strides = [1, 1]} : vector<16x96xf32> to vector<16x32xf32>
    %53 = vector.shape_cast %52 : vector<16x32xf32> to vector<2x8x32xf32>
    %54 = vector.extract_strided_slice %49 {offsets = [0, 64], sizes = [16, 32], strides = [1, 1]} : vector<16x96xf32> to vector<16x32xf32>
    %55 = vector.shape_cast %54 : vector<16x32xf32> to vector<2x8x32xf32>
    %56 = vector.extract_strided_slice %51 {offsets = [0, 0, 0], sizes = [2, 8, 16], strides = [1, 1, 1]} : vector<2x8x32xf32> to vector<2x8x16xf32>
    %57 = vector.extract_strided_slice %53 {offsets = [0, 0, 0], sizes = [2, 8, 16], strides = [1, 1, 1]} : vector<2x8x32xf32> to vector<2x8x16xf32>
    %58 = vector.extract_strided_slice %55 {offsets = [0, 0, 0], sizes = [2, 8, 16], strides = [1, 1, 1]} : vector<2x8x32xf32> to vector<2x8x16xf32>
    "tpu.trace_start"() <{level = 10 : i32, message = "bqd,bkd->bqk"}> : () -> ()
    %cst_24 = arith.constant dense<0.000000e+00> : vector<2x8x8xf32>
    %59 = tpu.matmul %56, %57, %cst_24 {dimension_numbers = #tpu.dot_dimension_numbers<[2], [2], [1], [1], [0, 0, 0, 1, 1, 1], [0], [0]>} : vector<2x8x16xf32>, vector<2x8x16xf32>, vector<2x8x8xf32> -> vector<2x8x8xf32>
    "tpu.trace_stop"() : () -> ()
    %cst_25 = arith.constant 2.500000e-01 : f32
    %60 = vector.broadcast %cst_25 : f32 to vector<2x8x8xf32>
    %61 = arith.mulf %59, %60 : vector<2x8x8xf32>
    %62 = arith.addf %61, %41 : vector<2x8x8xf32>
    %cst_26 = arith.constant dense<0xFF800000> : vector<2x8xf32>
    %63 = vector.multi_reduction <maximumf>, %62, %cst_26 [2] : vector<2x8x8xf32> to vector<2x8xf32>
    %64 = vector.shape_cast %63 : vector<2x8xf32> to vector<2x8x1xf32>
    %65 = vector.broadcast %64 : vector<2x8x1xf32> to vector<2x8x8xf32>
    %66 = arith.subf %62, %65 : vector<2x8x8xf32>
    %67 = math.exp %66 : vector<2x8x8xf32>
    %cst_27 = arith.constant dense<0.000000e+00> : vector<2x8xf32>
    %68 = vector.multi_reduction <add>, %67, %cst_27 [2] : vector<2x8x8xf32> to vector<2x8xf32>
    %69 = vector.shape_cast %68 : vector<2x8xf32> to vector<2x8x1xf32>
    %70 = tpu.reciprocal %69 {approx = true} : vector<2x8x1xf32> -> vector<2x8x1xf32>
    %71 = vector.broadcast %70 : vector<2x8x1xf32> to vector<2x8x8xf32>
    %72 = arith.mulf %67, %71 : vector<2x8x8xf32>
    "tpu.trace_start"() <{level = 10 : i32, message = "bqk,bkd->bqd"}> : () -> ()
    %cst_28 = arith.constant dense<0.000000e+00> : vector<2x8x16xf32>
    %73 = tpu.matmul %72, %58, %cst_28 {dimension_numbers = #tpu.dot_dimension_numbers<[2], [1], [1], [2], [0, 0, 0, 1, 1, 2], [0], [0]>} : vector<2x8x8xf32>, vector<2x8x16xf32>, vector<2x8x16xf32> -> vector<2x8x16xf32>
    "tpu.trace_stop"() : () -> ()
    %74 = vector.shape_cast %73 : vector<2x8x16xf32> to vector<16x16xf32>
    %c0_29 = arith.constant 0 : index
    %c0_30 = arith.constant 0 : index
    %75 = vector.load %arg20[%c0_29, %c0_30] : memref<16x32xf32, #tpu.memory_space<vmem>>, vector<16x16xf32>
    tpu.vector_store %arg20[%c0_29, %c0_30], %74 {strides = array<i32>} : memref<16x32xf32, #tpu.memory_space<vmem>>, vector<16x16xf32>,
    %76 = vector.extract_strided_slice %51 {offsets = [0, 0, 16], sizes = [2, 8, 16], strides = [1, 1, 1]} : vector<2x8x32xf32> to vector<2x8x16xf32>
    %77 = vector.extract_strided_slice %53 {offsets = [0, 0, 16], sizes = [2, 8, 16], strides = [1, 1, 1]} : vector<2x8x32xf32> to vector<2x8x16xf32>
    %78 = vector.extract_strided_slice %55 {offsets = [0, 0, 16], sizes = [2, 8, 16], strides = [1, 1, 1]} : vector<2x8x32xf32> to vector<2x8x16xf32>
    "tpu.trace_start"() <{level = 10 : i32, message = "bqd,bkd->bqk"}> : () -> ()
    %cst_31 = arith.constant dense<0.000000e+00> : vector<2x8x8xf32>
    %79 = tpu.matmul %76, %77, %cst_31 {dimension_numbers = #tpu.dot_dimension_numbers<[2], [2], [1], [1], [0, 0, 0, 1, 1, 1], [0], [0]>} : vector<2x8x16xf32>, vector<2x8x16xf32>, vector<2x8x8xf32> -> vector<2x8x8xf32>
    "tpu.trace_stop"() : () -> ()
    %cst_32 = arith.constant 2.500000e-01 : f32
    %80 = vector.broadcast %cst_32 : f32 to vector<2x8x8xf32>
    %81 = arith.mulf %79, %80 : vector<2x8x8xf32>
    %82 = arith.addf %81, %41 : vector<2x8x8xf32>
    %cst_33 = arith.constant dense<0xFF800000> : vector<2x8xf32>
    %83 = vector.multi_reduction <maximumf>, %82, %cst_33 [2] : vector<2x8x8xf32> to vector<2x8xf32>
    %84 = vector.shape_cast %83 : vector<2x8xf32> to vector<2x8x1xf32>
    %85 = vector.broadcast %84 : vector<2x8x1xf32> to vector<2x8x8xf32>
    %86 = arith.subf %82, %85 : vector<2x8x8xf32>
    %87 = math.exp %86 : vector<2x8x8xf32>
    %cst_34 = arith.constant dense<0.000000e+00> : vector<2x8xf32>
    %88 = vector.multi_reduction <add>, %87, %cst_34 [2] : vector<2x8x8xf32> to vector<2x8xf32>
    %89 = vector.shape_cast %88 : vector<2x8xf32> to vector<2x8x1xf32>
    %90 = tpu.reciprocal %89 {approx = true} : vector<2x8x1xf32> -> vector<2x8x1xf32>
    %91 = vector.broadcast %90 : vector<2x8x1xf32> to vector<2x8x8xf32>
    %92 = arith.mulf %87, %91 : vector<2x8x8xf32>
    "tpu.trace_start"() <{level = 10 : i32, message = "bqk,bkd->bqd"}> : () -> ()
    %cst_35 = arith.constant dense<0.000000e+00> : vector<2x8x16xf32>
    %93 = tpu.matmul %92, %78, %cst_35 {dimension_numbers = #tpu.dot_dimension_numbers<[2], [1], [1], [2], [0, 0, 0, 1, 1, 2], [0], [0]>} : vector<2x8x8xf32>, vector<2x8x16xf32>, vector<2x8x16xf32> -> vector<2x8x16xf32>
    "tpu.trace_stop"() : () -> ()
    %94 = vector.shape_cast %93 : vector<2x8x16xf32> to vector<16x16xf32>
    %c0_36 = arith.constant 0 : index
    %c16 = arith.constant 16 : index
    %95 = vector.load %arg20[%c0_36, %c16] : memref<16x32xf32, #tpu.memory_space<vmem>>, vector<16x16xf32>
    tpu.vector_store %arg20[%c0_36, %c16], %94 {strides = array<i32>} : memref<16x32xf32, #tpu.memory_space<vmem>>, vector<16x16xf32>,
    %c0_37 = arith.constant 0 : index
    %c0_38 = arith.constant 0 : index
    %96 = vector.load %arg20[%c0_37, %c0_38] : memref<16x32xf32, #tpu.memory_space<vmem>>, vector<16x32xf32>
    %c0_39 = arith.constant 0 : index
    %c0_40 = arith.constant 0 : index
    %c0_41 = arith.constant 0 : index
    %97 = vector.load %arg6[%c0_39, %c0_40, %c0_41] : memref<2x32x32xf32, #tpu.memory_space<vmem>>, vector<1x32x32xf32>
    %98 = vector.shape_cast %97 : vector<1x32x32xf32> to vector<32x32xf32>
    %cst_42 = arith.constant dense<0.000000e+00> : vector<16x32xf32>
    %99 = tpu.matmul %96, %98, %cst_42 {dimension_numbers = #tpu.dot_dimension_numbers<[1], [0], [0], [1], [0, 0, 1, 1], [], []>} : vector<16x32xf32>, vector<32x32xf32>, vector<16x32xf32> -> vector<16x32xf32>
    %c0_43 = arith.constant 0 : index
    %c0_44 = arith.constant 0 : index
    %100 = vector.load %arg7[%c0_43, %c0_44] : memref<2x32xf32, #tpu.memory_space<vmem>>, vector<1x32xf32>
    %101 = vector.shape_cast %100 : vector<1x32xf32> to vector<32xf32>
    %102 = vector.shape_cast %101 : vector<32xf32> to vector<1x32xf32>
    %103 = vector.broadcast %102 : vector<1x32xf32> to vector<16x32xf32>
    %104 = arith.addf %99, %103 : vector<16x32xf32>
    %105 = arith.addf %29, %104 : vector<16x32xf32>
    %c0_45 = arith.constant 0 : index
    %c0_46 = arith.constant 0 : index
    %106 = vector.load %arg8[%c0_45, %c0_46] : memref<2x32xf32, #tpu.memory_space<vmem>>, vector<1x32xf32>
    %107 = vector.shape_cast %106 : vector<1x32xf32> to vector<32xf32>
    %c0_47 = arith.constant 0 : index
    %c0_48 = arith.constant 0 : index
    %108 = vector.load %arg9[%c0_47, %c0_48] : memref<2x32xf32, #tpu.memory_space<vmem>>, vector<1x32xf32>
    %109 = vector.shape_cast %108 : vector<1x32xf32> to vector<32xf32>
    %cst_49 = arith.constant dense<0.000000e+00> : vector<16xf32>
    %110 = vector.multi_reduction <add>, %105, %cst_49 [1] : vector<16x32xf32> to vector<16xf32>
    %111 = vector.shape_cast %110 : vector<16xf32> to vector<16x1xf32>
    %cst_50 = arith.constant 3.200000e+01 : f32
    %112 = vector.broadcast %cst_50 : f32 to vector<16x1xf32>
    %113 = arith.divf %111, %112 : vector<16x1xf32>
    %114 = vector.broadcast %113 : vector<16x1xf32> to vector<16x32xf32>
    %115 = arith.subf %105, %114 : vector<16x32xf32>
    %116 = arith.mulf %115, %115 : vector<16x32xf32>
    %cst_51 = arith.constant dense<0.000000e+00> : vector<16xf32>
    %117 = vector.multi_reduction <add>, %116, %cst_51 [1] : vector<16x32xf32> to vector<16xf32>
    %118 = vector.shape_cast %117 : vector<16xf32> to vector<16x1xf32>
    %cst_52 = arith.constant 3.200000e+01 : f32
    %119 = vector.broadcast %cst_52 : f32 to vector<16x1xf32>
    %120 = arith.divf %118, %119 : vector<16x1xf32>
    %121 = vector.broadcast %113 : vector<16x1xf32> to vector<16x32xf32>
    %122 = arith.subf %105, %121 : vector<16x32xf32>
    %cst_53 = arith.constant 9.99999974E-6 : f32
    %123 = vector.broadcast %cst_53 : f32 to vector<16x1xf32>
    %124 = arith.addf %120, %123 : vector<16x1xf32>
    %125 = math.rsqrt %124 : vector<16x1xf32>
    %126 = vector.broadcast %125 : vector<16x1xf32> to vector<16x32xf32>
    %127 = arith.mulf %122, %126 : vector<16x32xf32>
    %128 = vector.shape_cast %107 : vector<32xf32> to vector<1x32xf32>
    %129 = vector.broadcast %128 : vector<1x32xf32> to vector<16x32xf32>
    %130 = arith.mulf %127, %129 : vector<16x32xf32>
    %131 = vector.shape_cast %109 : vector<32xf32> to vector<1x32xf32>
    %132 = vector.broadcast %131 : vector<1x32xf32> to vector<16x32xf32>
    %133 = arith.addf %130, %132 : vector<16x32xf32>
    %c0_54 = arith.constant 0 : index
    %c0_55 = arith.constant 0 : index
    %c0_56 = arith.constant 0 : index
    %134 = vector.load %arg10[%c0_54, %c0_55, %c0_56] : memref<2x32x64xf32, #tpu.memory_space<vmem>>, vector<1x32x64xf32>
    %135 = vector.shape_cast %134 : vector<1x32x64xf32> to vector<32x64xf32>
    %cst_57 = arith.constant dense<0.000000e+00> : vector<16x64xf32>
    %136 = tpu.matmul %133, %135, %cst_57 {dimension_numbers = #tpu.dot_dimension_numbers<[1], [0], [0], [1], [0, 0, 1, 1], [], []>} : vector<16x32xf32>, vector<32x64xf32>, vector<16x64xf32> -> vector<16x64xf32>
    %c0_58 = arith.constant 0 : index
    %c0_59 = arith.constant 0 : index
    %137 = vector.load %arg11[%c0_58, %c0_59] : memref<2x64xf32, #tpu.memory_space<vmem>>, vector<1x64xf32>
    %138 = vector.shape_cast %137 : vector<1x64xf32> to vector<64xf32>
    %139 = vector.shape_cast %138 : vector<64xf32> to vector<1x64xf32>
    %140 = vector.broadcast %139 : vector<1x64xf32> to vector<16x64xf32>
    %141 = arith.addf %136, %140 : vector<16x64xf32>
    %cst_60 = arith.constant 5.000000e-01 : f32
    %142 = vector.broadcast %cst_60 : f32 to vector<16x64xf32>
    %143 = arith.mulf %142, %141 : vector<16x64xf32>
    %cst_61 = arith.constant 4.471500e-02 : f32
    %144 = vector.broadcast %cst_61 : f32 to vector<16x64xf32>
    %145 = arith.mulf %144, %141 : vector<16x64xf32>
    %146 = arith.mulf %145, %141 : vector<16x64xf32>
    %147 = arith.mulf %146, %141 : vector<16x64xf32>
    %148 = arith.addf %141, %147 : vector<16x64xf32>
    %cst_62 = arith.constant 0.797884583 : f32
    %149 = vector.broadcast %cst_62 : f32 to vector<16x64xf32>
    %150 = arith.mulf %149, %148 : vector<16x64xf32>
    %151 = math.tanh %150 : vector<16x64xf32>
    %cst_63 = arith.constant 1.000000e+00 : f32
    %152 = vector.broadcast %cst_63 : f32 to vector<16x64xf32>
    %153 = arith.addf %152, %151 : vector<16x64xf32>
    %154 = arith.mulf %143, %153 : vector<16x64xf32>
    %c0_64 = arith.constant 0 : index
    %c0_65 = arith.constant 0 : index
    %c0_66 = arith.constant 0 : index
    %155 = vector.load %arg12[%c0_64, %c0_65, %c0_66] : memref<2x64x32xf32, #tpu.memory_space<vmem>>, vector<1x64x32xf32>
    %156 = vector.shape_cast %155 : vector<1x64x32xf32> to vector<64x32xf32>
    %cst_67 = arith.constant dense<0.000000e+00> : vector<16x32xf32>
    %157 = tpu.matmul %154, %156, %cst_67 {dimension_numbers = #tpu.dot_dimension_numbers<[1], [0], [0], [1], [0, 0, 1, 1], [], []>} : vector<16x64xf32>, vector<64x32xf32>, vector<16x32xf32> -> vector<16x32xf32>
    %c0_68 = arith.constant 0 : index
    %c0_69 = arith.constant 0 : index
    %158 = vector.load %arg13[%c0_68, %c0_69] : memref<2x32xf32, #tpu.memory_space<vmem>>, vector<1x32xf32>
    %159 = vector.shape_cast %158 : vector<1x32xf32> to vector<32xf32>
    %160 = vector.shape_cast %159 : vector<32xf32> to vector<1x32xf32>
    %161 = vector.broadcast %160 : vector<1x32xf32> to vector<16x32xf32>
    %162 = arith.addf %157, %161 : vector<16x32xf32>
    %163 = arith.addf %133, %162 : vector<16x32xf32>
    %c0_70 = arith.constant 0 : index
    %c0_71 = arith.constant 0 : index
    %164 = vector.load %arg14[%c0_70, %c0_71] : memref<2x32xf32, #tpu.memory_space<vmem>>, vector<1x32xf32>
    %165 = vector.shape_cast %164 : vector<1x32xf32> to vector<32xf32>
    %c0_72 = arith.constant 0 : index
    %c0_73 = arith.constant 0 : index
    %166 = vector.load %arg15[%c0_72, %c0_73] : memref<2x32xf32, #tpu.memory_space<vmem>>, vector<1x32xf32>
    %167 = vector.shape_cast %166 : vector<1x32xf32> to vector<32xf32>
    %cst_74 = arith.constant dense<0.000000e+00> : vector<16xf32>
    %168 = vector.multi_reduction <add>, %163, %cst_74 [1] : vector<16x32xf32> to vector<16xf32>
    %169 = vector.shape_cast %168 : vector<16xf32> to vector<16x1xf32>
    %cst_75 = arith.constant 3.200000e+01 : f32
    %170 = vector.broadcast %cst_75 : f32 to vector<16x1xf32>
    %171 = arith.divf %169, %170 : vector<16x1xf32>
    %172 = vector.broadcast %171 : vector<16x1xf32> to vector<16x32xf32>
    %173 = arith.subf %163, %172 : vector<16x32xf32>
    %174 = arith.mulf %173, %173 : vector<16x32xf32>
    %cst_76 = arith.constant dense<0.000000e+00> : vector<16xf32>
    %175 = vector.multi_reduction <add>, %174, %cst_76 [1] : vector<16x32xf32> to vector<16xf32>
    %176 = vector.shape_cast %175 : vector<16xf32> to vector<16x1xf32>
    %cst_77 = arith.constant 3.200000e+01 : f32
    %177 = vector.broadcast %cst_77 : f32 to vector<16x1xf32>
    %178 = arith.divf %176, %177 : vector<16x1xf32>
    %179 = vector.broadcast %171 : vector<16x1xf32> to vector<16x32xf32>
    %180 = arith.subf %163, %179 : vector<16x32xf32>
    %cst_78 = arith.constant 9.99999974E-6 : f32
    %181 = vector.broadcast %cst_78 : f32 to vector<16x1xf32>
    %182 = arith.addf %178, %181 : vector<16x1xf32>
    %183 = math.rsqrt %182 : vector<16x1xf32>
    %184 = vector.broadcast %183 : vector<16x1xf32> to vector<16x32xf32>
    %185 = arith.mulf %180, %184 : vector<16x32xf32>
    %186 = vector.shape_cast %165 : vector<32xf32> to vector<1x32xf32>
    %187 = vector.broadcast %186 : vector<1x32xf32> to vector<16x32xf32>
    %188 = arith.mulf %185, %187 : vector<16x32xf32>
    %189 = vector.shape_cast %167 : vector<32xf32> to vector<1x32xf32>
    %190 = vector.broadcast %189 : vector<1x32xf32> to vector<16x32xf32>
    %191 = arith.addf %188, %190 : vector<16x32xf32>
    %192 = vector.shape_cast %191 : vector<16x32xf32> to vector<2x8x32xf32>
    %c1 = arith.constant 1 : index
    %c0_79 = arith.constant 0 : index
    %c0_80 = arith.constant 0 : index
    %c0_81 = arith.constant 0 : index
    %193 = vector.load %arg18[%c1, %c0_79, %c0_80, %c0_81] : memref<3x2x8x32xf32, #tpu.memory_space<vmem>>, vector<1x2x8x32xf32>
    %194 = vector.shape_cast %193 : vector<1x2x8x32xf32> to vector<2x8x32xf32>
    %195 = vector.shape_cast %192 : vector<2x8x32xf32> to vector<1x2x8x32xf32>
    tpu.vector_store %arg18[%c1, %c0_79, %c0_80, %c0_81], %195 {strides = array<i32>} : memref<3x2x8x32xf32, #tpu.memory_space<vmem>>, vector<1x2x8x32xf32>,
    %c1_82 = arith.constant 1 : index
    %c0_83 = arith.constant 0 : index
    %c0_84 = arith.constant 0 : index
    %196 = vector.load %arg4[%c1_82, %c0_83, %c0_84] : memref<2x32x96xf32, #tpu.memory_space<vmem>>, vector<1x32x96xf32>
    %197 = vector.shape_cast %196 : vector<1x32x96xf32> to vector<32x96xf32>
    %cst_85 = arith.constant dense<0.000000e+00> : vector<16x96xf32>
    %198 = tpu.matmul %191, %197, %cst_85 {dimension_numbers = #tpu.dot_dimension_numbers<[1], [0], [0], [1], [0, 0, 1, 1], [], []>} : vector<16x32xf32>, vector<32x96xf32>, vector<16x96xf32> -> vector<16x96xf32>
    %c1_86 = arith.constant 1 : index
    %c0_87 = arith.constant 0 : index
    %199 = vector.load %arg5[%c1_86, %c0_87] : memref<2x96xf32, #tpu.memory_space<vmem>>, vector<1x96xf32>
    %200 = vector.shape_cast %199 : vector<1x96xf32> to vector<96xf32>
    %201 = vector.shape_cast %200 : vector<96xf32> to vector<1x96xf32>
    %202 = vector.broadcast %201 : vector<1x96xf32> to vector<16x96xf32>
    %203 = arith.addf %198, %202 : vector<16x96xf32>
    %204 = vector.extract_strided_slice %203 {offsets = [0, 0], sizes = [16, 32], strides = [1, 1]} : vector<16x96xf32> to vector<16x32xf32>
    %205 = vector.shape_cast %204 : vector<16x32xf32> to vector<2x8x32xf32>
    %206 = vector.extract_strided_slice %203 {offsets = [0, 32], sizes = [16, 32], strides = [1, 1]} : vector<16x96xf32> to vector<16x32xf32>
    %207 = vector.shape_cast %206 : vector<16x32xf32> to vector<2x8x32xf32>
    %208 = vector.extract_strided_slice %203 {offsets = [0, 64], sizes = [16, 32], strides = [1, 1]} : vector<16x96xf32> to vector<16x32xf32>
    %209 = vector.shape_cast %208 : vector<16x32xf32> to vector<2x8x32xf32>
    %210 = vector.extract_strided_slice %205 {offsets = [0, 0, 0], sizes = [2, 8, 16], strides = [1, 1, 1]} : vector<2x8x32xf32> to vector<2x8x16xf32>
    %211 = vector.extract_strided_slice %207 {offsets = [0, 0, 0], sizes = [2, 8, 16], strides = [1, 1, 1]} : vector<2x8x32xf32> to vector<2x8x16xf32>
    %212 = vector.extract_strided_slice %209 {offsets = [0, 0, 0], sizes = [2, 8, 16], strides = [1, 1, 1]} : vector<2x8x32xf32> to vector<2x8x16xf32>
    "tpu.trace_start"() <{level = 10 : i32, message = "bqd,bkd->bqk"}> : () -> ()
    %cst_88 = arith.constant dense<0.000000e+00> : vector<2x8x8xf32>
    %213 = tpu.matmul %210, %211, %cst_88 {dimension_numbers = #tpu.dot_dimension_numbers<[2], [2], [1], [1], [0, 0, 0, 1, 1, 1], [0], [0]>} : vector<2x8x16xf32>, vector<2x8x16xf32>, vector<2x8x8xf32> -> vector<2x8x8xf32>
    "tpu.trace_stop"() : () -> ()
    %cst_89 = arith.constant 2.500000e-01 : f32
    %214 = vector.broadcast %cst_89 : f32 to vector<2x8x8xf32>
    %215 = arith.mulf %213, %214 : vector<2x8x8xf32>
    %216 = arith.addf %215, %41 : vector<2x8x8xf32>
    %cst_90 = arith.constant dense<0xFF800000> : vector<2x8xf32>
    %217 = vector.multi_reduction <maximumf>, %216, %cst_90 [2] : vector<2x8x8xf32> to vector<2x8xf32>
    %218 = vector.shape_cast %217 : vector<2x8xf32> to vector<2x8x1xf32>
    %219 = vector.broadcast %218 : vector<2x8x1xf32> to vector<2x8x8xf32>
    %220 = arith.subf %216, %219 : vector<2x8x8xf32>
    %221 = math.exp %220 : vector<2x8x8xf32>
    %cst_91 = arith.constant dense<0.000000e+00> : vector<2x8xf32>
    %222 = vector.multi_reduction <add>, %221, %cst_91 [2] : vector<2x8x8xf32> to vector<2x8xf32>
    %223 = vector.shape_cast %222 : vector<2x8xf32> to vector<2x8x1xf32>
    %224 = tpu.reciprocal %223 {approx = true} : vector<2x8x1xf32> -> vector<2x8x1xf32>
    %225 = vector.broadcast %224 : vector<2x8x1xf32> to vector<2x8x8xf32>
    %226 = arith.mulf %221, %225 : vector<2x8x8xf32>
    "tpu.trace_start"() <{level = 10 : i32, message = "bqk,bkd->bqd"}> : () -> ()
    %cst_92 = arith.constant dense<0.000000e+00> : vector<2x8x16xf32>
    %227 = tpu.matmul %226, %212, %cst_92 {dimension_numbers = #tpu.dot_dimension_numbers<[2], [1], [1], [2], [0, 0, 0, 1, 1, 2], [0], [0]>} : vector<2x8x8xf32>, vector<2x8x16xf32>, vector<2x8x16xf32> -> vector<2x8x16xf32>
    "tpu.trace_stop"() : () -> ()
    %228 = vector.shape_cast %227 : vector<2x8x16xf32> to vector<16x16xf32>
    %c0_93 = arith.constant 0 : index
    %c0_94 = arith.constant 0 : index
    %229 = vector.load %arg20[%c0_93, %c0_94] : memref<16x32xf32, #tpu.memory_space<vmem>>, vector<16x16xf32>
    tpu.vector_store %arg20[%c0_93, %c0_94], %228 {strides = array<i32>} : memref<16x32xf32, #tpu.memory_space<vmem>>, vector<16x16xf32>,
    %230 = vector.extract_strided_slice %205 {offsets = [0, 0, 16], sizes = [2, 8, 16], strides = [1, 1, 1]} : vector<2x8x32xf32> to vector<2x8x16xf32>
    %231 = vector.extract_strided_slice %207 {offsets = [0, 0, 16], sizes = [2, 8, 16], strides = [1, 1, 1]} : vector<2x8x32xf32> to vector<2x8x16xf32>
    %232 = vector.extract_strided_slice %209 {offsets = [0, 0, 16], sizes = [2, 8, 16], strides = [1, 1, 1]} : vector<2x8x32xf32> to vector<2x8x16xf32>
    "tpu.trace_start"() <{level = 10 : i32, message = "bqd,bkd->bqk"}> : () -> ()
    %cst_95 = arith.constant dense<0.000000e+00> : vector<2x8x8xf32>
    %233 = tpu.matmul %230, %231, %cst_95 {dimension_numbers = #tpu.dot_dimension_numbers<[2], [2], [1], [1], [0, 0, 0, 1, 1, 1], [0], [0]>} : vector<2x8x16xf32>, vector<2x8x16xf32>, vector<2x8x8xf32> -> vector<2x8x8xf32>
    "tpu.trace_stop"() : () -> ()
    %cst_96 = arith.constant 2.500000e-01 : f32
    %234 = vector.broadcast %cst_96 : f32 to vector<2x8x8xf32>
    %235 = arith.mulf %233, %234 : vector<2x8x8xf32>
    %236 = arith.addf %235, %41 : vector<2x8x8xf32>
    %cst_97 = arith.constant dense<0xFF800000> : vector<2x8xf32>
    %237 = vector.multi_reduction <maximumf>, %236, %cst_97 [2] : vector<2x8x8xf32> to vector<2x8xf32>
    %238 = vector.shape_cast %237 : vector<2x8xf32> to vector<2x8x1xf32>
    %239 = vector.broadcast %238 : vector<2x8x1xf32> to vector<2x8x8xf32>
    %240 = arith.subf %236, %239 : vector<2x8x8xf32>
    %241 = math.exp %240 : vector<2x8x8xf32>
    %cst_98 = arith.constant dense<0.000000e+00> : vector<2x8xf32>
    %242 = vector.multi_reduction <add>, %241, %cst_98 [2] : vector<2x8x8xf32> to vector<2x8xf32>
    %243 = vector.shape_cast %242 : vector<2x8xf32> to vector<2x8x1xf32>
    %244 = tpu.reciprocal %243 {approx = true} : vector<2x8x1xf32> -> vector<2x8x1xf32>
    %245 = vector.broadcast %244 : vector<2x8x1xf32> to vector<2x8x8xf32>
    %246 = arith.mulf %241, %245 : vector<2x8x8xf32>
    "tpu.trace_start"() <{level = 10 : i32, message = "bqk,bkd->bqd"}> : () -> ()
    %cst_99 = arith.constant dense<0.000000e+00> : vector<2x8x16xf32>
    %247 = tpu.matmul %246, %232, %cst_99 {dimension_numbers = #tpu.dot_dimension_numbers<[2], [1], [1], [2], [0, 0, 0, 1, 1, 2], [0], [0]>} : vector<2x8x8xf32>, vector<2x8x16xf32>, vector<2x8x16xf32> -> vector<2x8x16xf32>
    "tpu.trace_stop"() : () -> ()
    %248 = vector.shape_cast %247 : vector<2x8x16xf32> to vector<16x16xf32>
    %c0_100 = arith.constant 0 : index
    %c16_101 = arith.constant 16 : index
    %249 = vector.load %arg20[%c0_100, %c16_101] : memref<16x32xf32, #tpu.memory_space<vmem>>, vector<16x16xf32>
    tpu.vector_store %arg20[%c0_100, %c16_101], %248 {strides = array<i32>} : memref<16x32xf32, #tpu.memory_space<vmem>>, vector<16x16xf32>,
    %c0_102 = arith.constant 0 : index
    %c0_103 = arith.constant 0 : index
    %250 = vector.load %arg20[%c0_102, %c0_103] : memref<16x32xf32, #tpu.memory_space<vmem>>, vector<16x32xf32>
    %c1_104 = arith.constant 1 : index
    %c0_105 = arith.constant 0 : index
    %c0_106 = arith.constant 0 : index
    %251 = vector.load %arg6[%c1_104, %c0_105, %c0_106] : memref<2x32x32xf32, #tpu.memory_space<vmem>>, vector<1x32x32xf32>
    %252 = vector.shape_cast %251 : vector<1x32x32xf32> to vector<32x32xf32>
    %cst_107 = arith.constant dense<0.000000e+00> : vector<16x32xf32>
    %253 = tpu.matmul %250, %252, %cst_107 {dimension_numbers = #tpu.dot_dimension_numbers<[1], [0], [0], [1], [0, 0, 1, 1], [], []>} : vector<16x32xf32>, vector<32x32xf32>, vector<16x32xf32> -> vector<16x32xf32>
    %c1_108 = arith.constant 1 : index
    %c0_109 = arith.constant 0 : index
    %254 = vector.load %arg7[%c1_108, %c0_109] : memref<2x32xf32, #tpu.memory_space<vmem>>, vector<1x32xf32>
    %255 = vector.shape_cast %254 : vector<1x32xf32> to vector<32xf32>
    %256 = vector.shape_cast %255 : vector<32xf32> to vector<1x32xf32>
    %257 = vector.broadcast %256 : vector<1x32xf32> to vector<16x32xf32>
    %258 = arith.addf %253, %257 : vector<16x32xf32>
    %259 = arith.addf %191, %258 : vector<16x32xf32>
    %c1_110 = arith.constant 1 : index
    %c0_111 = arith.constant 0 : index
    %260 = vector.load %arg8[%c1_110, %c0_111] : memref<2x32xf32, #tpu.memory_space<vmem>>, vector<1x32xf32>
    %261 = vector.shape_cast %260 : vector<1x32xf32> to vector<32xf32>
    %c1_112 = arith.constant 1 : index
    %c0_113 = arith.constant 0 : index
    %262 = vector.load %arg9[%c1_112, %c0_113] : memref<2x32xf32, #tpu.memory_space<vmem>>, vector<1x32xf32>
    %263 = vector.shape_cast %262 : vector<1x32xf32> to vector<32xf32>
    %cst_114 = arith.constant dense<0.000000e+00> : vector<16xf32>
    %264 = vector.multi_reduction <add>, %259, %cst_114 [1] : vector<16x32xf32> to vector<16xf32>
    %265 = vector.shape_cast %264 : vector<16xf32> to vector<16x1xf32>
    %cst_115 = arith.constant 3.200000e+01 : f32
    %266 = vector.broadcast %cst_115 : f32 to vector<16x1xf32>
    %267 = arith.divf %265, %266 : vector<16x1xf32>
    %268 = vector.broadcast %267 : vector<16x1xf32> to vector<16x32xf32>
    %269 = arith.subf %259, %268 : vector<16x32xf32>
    %270 = arith.mulf %269, %269 : vector<16x32xf32>
    %cst_116 = arith.constant dense<0.000000e+00> : vector<16xf32>
    %271 = vector.multi_reduction <add>, %270, %cst_116 [1] : vector<16x32xf32> to vector<16xf32>
    %272 = vector.shape_cast %271 : vector<16xf32> to vector<16x1xf32>
    %cst_117 = arith.constant 3.200000e+01 : f32
    %273 = vector.broadcast %cst_117 : f32 to vector<16x1xf32>
    %274 = arith.divf %272, %273 : vector<16x1xf32>
    %275 = vector.broadcast %267 : vector<16x1xf32> to vector<16x32xf32>
    %276 = arith.subf %259, %275 : vector<16x32xf32>
    %cst_118 = arith.constant 9.99999974E-6 : f32
    %277 = vector.broadcast %cst_118 : f32 to vector<16x1xf32>
    %278 = arith.addf %274, %277 : vector<16x1xf32>
    %279 = math.rsqrt %278 : vector<16x1xf32>
    %280 = vector.broadcast %279 : vector<16x1xf32> to vector<16x32xf32>
    %281 = arith.mulf %276, %280 : vector<16x32xf32>
    %282 = vector.shape_cast %261 : vector<32xf32> to vector<1x32xf32>
    %283 = vector.broadcast %282 : vector<1x32xf32> to vector<16x32xf32>
    %284 = arith.mulf %281, %283 : vector<16x32xf32>
    %285 = vector.shape_cast %263 : vector<32xf32> to vector<1x32xf32>
    %286 = vector.broadcast %285 : vector<1x32xf32> to vector<16x32xf32>
    %287 = arith.addf %284, %286 : vector<16x32xf32>
    %c1_119 = arith.constant 1 : index
    %c0_120 = arith.constant 0 : index
    %c0_121 = arith.constant 0 : index
    %288 = vector.load %arg10[%c1_119, %c0_120, %c0_121] : memref<2x32x64xf32, #tpu.memory_space<vmem>>, vector<1x32x64xf32>
    %289 = vector.shape_cast %288 : vector<1x32x64xf32> to vector<32x64xf32>
    %cst_122 = arith.constant dense<0.000000e+00> : vector<16x64xf32>
    %290 = tpu.matmul %287, %289, %cst_122 {dimension_numbers = #tpu.dot_dimension_numbers<[1], [0], [0], [1], [0, 0, 1, 1], [], []>} : vector<16x32xf32>, vector<32x64xf32>, vector<16x64xf32> -> vector<16x64xf32>
    %c1_123 = arith.constant 1 : index
    %c0_124 = arith.constant 0 : index
    %291 = vector.load %arg11[%c1_123, %c0_124] : memref<2x64xf32, #tpu.memory_space<vmem>>, vector<1x64xf32>
    %292 = vector.shape_cast %291 : vector<1x64xf32> to vector<64xf32>
    %293 = vector.shape_cast %292 : vector<64xf32> to vector<1x64xf32>
    %294 = vector.broadcast %293 : vector<1x64xf32> to vector<16x64xf32>
    %295 = arith.addf %290, %294 : vector<16x64xf32>
    %cst_125 = arith.constant 5.000000e-01 : f32
    %296 = vector.broadcast %cst_125 : f32 to vector<16x64xf32>
    %297 = arith.mulf %296, %295 : vector<16x64xf32>
    %cst_126 = arith.constant 4.471500e-02 : f32
    %298 = vector.broadcast %cst_126 : f32 to vector<16x64xf32>
    %299 = arith.mulf %298, %295 : vector<16x64xf32>
    %300 = arith.mulf %299, %295 : vector<16x64xf32>
    %301 = arith.mulf %300, %295 : vector<16x64xf32>
    %302 = arith.addf %295, %301 : vector<16x64xf32>
    %cst_127 = arith.constant 0.797884583 : f32
    %303 = vector.broadcast %cst_127 : f32 to vector<16x64xf32>
    %304 = arith.mulf %303, %302 : vector<16x64xf32>
    %305 = math.tanh %304 : vector<16x64xf32>
    %cst_128 = arith.constant 1.000000e+00 : f32
    %306 = vector.broadcast %cst_128 : f32 to vector<16x64xf32>
    %307 = arith.addf %306, %305 : vector<16x64xf32>
    %308 = arith.mulf %297, %307 : vector<16x64xf32>
    %c1_129 = arith.constant 1 : index
    %c0_130 = arith.constant 0 : index
    %c0_131 = arith.constant 0 : index
    %309 = vector.load %arg12[%c1_129, %c0_130, %c0_131] : memref<2x64x32xf32, #tpu.memory_space<vmem>>, vector<1x64x32xf32>
    %310 = vector.shape_cast %309 : vector<1x64x32xf32> to vector<64x32xf32>
    %cst_132 = arith.constant dense<0.000000e+00> : vector<16x32xf32>
    %311 = tpu.matmul %308, %310, %cst_132 {dimension_numbers = #tpu.dot_dimension_numbers<[1], [0], [0], [1], [0, 0, 1, 1], [], []>} : vector<16x64xf32>, vector<64x32xf32>, vector<16x32xf32> -> vector<16x32xf32>
    %c1_133 = arith.constant 1 : index
    %c0_134 = arith.constant 0 : index
    %312 = vector.load %arg13[%c1_133, %c0_134] : memref<2x32xf32, #tpu.memory_space<vmem>>, vector<1x32xf32>
    %313 = vector.shape_cast %312 : vector<1x32xf32> to vector<32xf32>
    %314 = vector.shape_cast %313 : vector<32xf32> to vector<1x32xf32>
    %315 = vector.broadcast %314 : vector<1x32xf32> to vector<16x32xf32>
    %316 = arith.addf %311, %315 : vector<16x32xf32>
    %317 = arith.addf %287, %316 : vector<16x32xf32>
    %c1_135 = arith.constant 1 : index
    %c0_136 = arith.constant 0 : index
    %318 = vector.load %arg14[%c1_135, %c0_136] : memref<2x32xf32, #tpu.memory_space<vmem>>, vector<1x32xf32>
    %319 = vector.shape_cast %318 : vector<1x32xf32> to vector<32xf32>
    %c1_137 = arith.constant 1 : index
    %c0_138 = arith.constant 0 : index
    %320 = vector.load %arg15[%c1_137, %c0_138] : memref<2x32xf32, #tpu.memory_space<vmem>>, vector<1x32xf32>
    %321 = vector.shape_cast %320 : vector<1x32xf32> to vector<32xf32>
    %cst_139 = arith.constant dense<0.000000e+00> : vector<16xf32>
    %322 = vector.multi_reduction <add>, %317, %cst_139 [1] : vector<16x32xf32> to vector<16xf32>
    %323 = vector.shape_cast %322 : vector<16xf32> to vector<16x1xf32>
    %cst_140 = arith.constant 3.200000e+01 : f32
    %324 = vector.broadcast %cst_140 : f32 to vector<16x1xf32>
    %325 = arith.divf %323, %324 : vector<16x1xf32>
    %326 = vector.broadcast %325 : vector<16x1xf32> to vector<16x32xf32>
    %327 = arith.subf %317, %326 : vector<16x32xf32>
    %328 = arith.mulf %327, %327 : vector<16x32xf32>
    %cst_141 = arith.constant dense<0.000000e+00> : vector<16xf32>
    %329 = vector.multi_reduction <add>, %328, %cst_141 [1] : vector<16x32xf32> to vector<16xf32>
    %330 = vector.shape_cast %329 : vector<16xf32> to vector<16x1xf32>
    %cst_142 = arith.constant 3.200000e+01 : f32
    %331 = vector.broadcast %cst_142 : f32 to vector<16x1xf32>
    %332 = arith.divf %330, %331 : vector<16x1xf32>
    %333 = vector.broadcast %325 : vector<16x1xf32> to vector<16x32xf32>
    %334 = arith.subf %317, %333 : vector<16x32xf32>
    %cst_143 = arith.constant 9.99999974E-6 : f32
    %335 = vector.broadcast %cst_143 : f32 to vector<16x1xf32>
    %336 = arith.addf %332, %335 : vector<16x1xf32>
    %337 = math.rsqrt %336 : vector<16x1xf32>
    %338 = vector.broadcast %337 : vector<16x1xf32> to vector<16x32xf32>
    %339 = arith.mulf %334, %338 : vector<16x32xf32>
    %340 = vector.shape_cast %319 : vector<32xf32> to vector<1x32xf32>
    %341 = vector.broadcast %340 : vector<1x32xf32> to vector<16x32xf32>
    %342 = arith.mulf %339, %341 : vector<16x32xf32>
    %343 = vector.shape_cast %321 : vector<32xf32> to vector<1x32xf32>
    %344 = vector.broadcast %343 : vector<1x32xf32> to vector<16x32xf32>
    %345 = arith.addf %342, %344 : vector<16x32xf32>
    %346 = vector.shape_cast %345 : vector<16x32xf32> to vector<2x8x32xf32>
    %c2 = arith.constant 2 : index
    %c0_144 = arith.constant 0 : index
    %c0_145 = arith.constant 0 : index
    %c0_146 = arith.constant 0 : index
    %347 = vector.load %arg18[%c2, %c0_144, %c0_145, %c0_146] : memref<3x2x8x32xf32, #tpu.memory_space<vmem>>, vector<1x2x8x32xf32>
    %348 = vector.shape_cast %347 : vector<1x2x8x32xf32> to vector<2x8x32xf32>
    %349 = vector.shape_cast %346 : vector<2x8x32xf32> to vector<1x2x8x32xf32>
    tpu.vector_store %arg18[%c2, %c0_144, %c0_145, %c0_146], %349 {strides = array<i32>} : memref<3x2x8x32xf32, #tpu.memory_space<vmem>>, vector<1x2x8x32xf32>,
    %cst_147 = arith.constant 0.000000e+00 : f32
    %350 = vector.broadcast %cst_147 : f32 to vector<2x4xf32>
    %c0_148 = arith.constant 0 : index
    %c0_149 = arith.constant 0 : index
    %351 = vector.load %arg17[%c0_148, %c0_149] : memref<1x4xf32, #tpu.memory_space<vmem>>, vector<1x4xf32>
    %352 = vector.shape_cast %351 : vector<1x4xf32> to vector<4xf32>
    %353 = vector.shape_cast %352 : vector<4xf32> to vector<1x4xf32>
    %354 = vector.broadcast %353 : vector<1x4xf32> to vector<2x4xf32>
    %355 = arith.addf %350, %354 : vector<2x4xf32>
    %c2_150 = arith.constant 2 : index
    %c0_151 = arith.constant 0 : index
    %c0_152 = arith.constant 0 : index
    %c0_153 = arith.constant 0 : index
    %356 = vector.load %arg18[%c2_150, %c0_151, %c0_152, %c0_153] : memref<3x2x8x32xf32, #tpu.memory_space<vmem>>, vector<1x2x1x32xf32>
    %357 = vector.shape_cast %356 : vector<1x2x1x32xf32> to vector<2x32xf32>
    %c0_154 = arith.constant 0 : index
    %c0_155 = arith.constant 0 : index
    %c0_156 = arith.constant 0 : index
    %358 = vector.load %arg16[%c0_154, %c0_155, %c0_156] : memref<8x32x4xf32, #tpu.memory_space<vmem>>, vector<1x32x4xf32>
    %359 = vector.shape_cast %358 : vector<1x32x4xf32> to vector<32x4xf32>
    %cst_157 = arith.constant dense<0.000000e+00> : vector<2x4xf32>
    %360 = tpu.matmul %357, %359, %cst_157 {dimension_numbers = #tpu.dot_dimension_numbers<[1], [0], [0], [1], [0, 0, 1, 1], [], []>} : vector<2x32xf32>, vector<32x4xf32>, vector<2x4xf32> -> vector<2x4xf32>
    %361 = arith.addf %355, %360 : vector<2x4xf32>
    %c2_158 = arith.constant 2 : index
    %c0_159 = arith.constant 0 : index
    %c1_160 = arith.constant 1 : index
    %c0_161 = arith.constant 0 : index
    %362 = vector.load %arg18[%c2_158, %c0_159, %c1_160, %c0_161] : memref<3x2x8x32xf32, #tpu.memory_space<vmem>>, vector<1x2x1x32xf32>
    %363 = vector.shape_cast %362 : vector<1x2x1x32xf32> to vector<2x32xf32>
    %c1_162 = arith.constant 1 : index
    %c0_163 = arith.constant 0 : index
    %c0_164 = arith.constant 0 : index
    %364 = vector.load %arg16[%c1_162, %c0_163, %c0_164] : memref<8x32x4xf32, #tpu.memory_space<vmem>>, vector<1x32x4xf32>
    %365 = vector.shape_cast %364 : vector<1x32x4xf32> to vector<32x4xf32>
    %cst_165 = arith.constant dense<0.000000e+00> : vector<2x4xf32>
    %366 = tpu.matmul %363, %365, %cst_165 {dimension_numbers = #tpu.dot_dimension_numbers<[1], [0], [0], [1], [0, 0, 1, 1], [], []>} : vector<2x32xf32>, vector<32x4xf32>, vector<2x4xf32> -> vector<2x4xf32>
    %367 = arith.addf %361, %366 : vector<2x4xf32>
    %c2_166 = arith.constant 2 : index
    %c0_167 = arith.constant 0 : index
    %c2_168 = arith.constant 2 : index
    %c0_169 = arith.constant 0 : index
    %368 = vector.load %arg18[%c2_166, %c0_167, %c2_168, %c0_169] : memref<3x2x8x32xf32, #tpu.memory_space<vmem>>, vector<1x2x1x32xf32>
    %369 = vector.shape_cast %368 : vector<1x2x1x32xf32> to vector<2x32xf32>
    %c2_170 = arith.constant 2 : index
    %c0_171 = arith.constant 0 : index
    %c0_172 = arith.constant 0 : index
    %370 = vector.load %arg16[%c2_170, %c0_171, %c0_172] : memref<8x32x4xf32, #tpu.memory_space<vmem>>, vector<1x32x4xf32>
    %371 = vector.shape_cast %370 : vector<1x32x4xf32> to vector<32x4xf32>
    %cst_173 = arith.constant dense<0.000000e+00> : vector<2x4xf32>
    %372 = tpu.matmul %369, %371, %cst_173 {dimension_numbers = #tpu.dot_dimension_numbers<[1], [0], [0], [1], [0, 0, 1, 1], [], []>} : vector<2x32xf32>, vector<32x4xf32>, vector<2x4xf32> -> vector<2x4xf32>
    %373 = arith.addf %367, %372 : vector<2x4xf32>
    %c2_174 = arith.constant 2 : index
    %c0_175 = arith.constant 0 : index
    %c3 = arith.constant 3 : index
    %c0_176 = arith.constant 0 : index
    %374 = vector.load %arg18[%c2_174, %c0_175, %c3, %c0_176] : memref<3x2x8x32xf32, #tpu.memory_space<vmem>>, vector<1x2x1x32xf32>
    %375 = vector.shape_cast %374 : vector<1x2x1x32xf32> to vector<2x32xf32>
    %c3_177 = arith.constant 3 : index
    %c0_178 = arith.constant 0 : index
    %c0_179 = arith.constant 0 : index
    %376 = vector.load %arg16[%c3_177, %c0_178, %c0_179] : memref<8x32x4xf32, #tpu.memory_space<vmem>>, vector<1x32x4xf32>
    %377 = vector.shape_cast %376 : vector<1x32x4xf32> to vector<32x4xf32>
    %cst_180 = arith.constant dense<0.000000e+00> : vector<2x4xf32>
    %378 = tpu.matmul %375, %377, %cst_180 {dimension_numbers = #tpu.dot_dimension_numbers<[1], [0], [0], [1], [0, 0, 1, 1], [], []>} : vector<2x32xf32>, vector<32x4xf32>, vector<2x4xf32> -> vector<2x4xf32>
    %379 = arith.addf %373, %378 : vector<2x4xf32>
    %c2_181 = arith.constant 2 : index
    %c0_182 = arith.constant 0 : index
    %c4 = arith.constant 4 : index
    %c0_183 = arith.constant 0 : index
    %380 = vector.load %arg18[%c2_181, %c0_182, %c4, %c0_183] : memref<3x2x8x32xf32, #tpu.memory_space<vmem>>, vector<1x2x1x32xf32>
    %381 = vector.shape_cast %380 : vector<1x2x1x32xf32> to vector<2x32xf32>
    %c4_184 = arith.constant 4 : index
    %c0_185 = arith.constant 0 : index
    %c0_186 = arith.constant 0 : index
    %382 = vector.load %arg16[%c4_184, %c0_185, %c0_186] : memref<8x32x4xf32, #tpu.memory_space<vmem>>, vector<1x32x4xf32>
    %383 = vector.shape_cast %382 : vector<1x32x4xf32> to vector<32x4xf32>
    %cst_187 = arith.constant dense<0.000000e+00> : vector<2x4xf32>
    %384 = tpu.matmul %381, %383, %cst_187 {dimension_numbers = #tpu.dot_dimension_numbers<[1], [0], [0], [1], [0, 0, 1, 1], [], []>} : vector<2x32xf32>, vector<32x4xf32>, vector<2x4xf32> -> vector<2x4xf32>
    %385 = arith.addf %379, %384 : vector<2x4xf32>
    %c2_188 = arith.constant 2 : index
    %c0_189 = arith.constant 0 : index
    %c5 = arith.constant 5 : index
    %c0_190 = arith.constant 0 : index
    %386 = vector.load %arg18[%c2_188, %c0_189, %c5, %c0_190] : memref<3x2x8x32xf32, #tpu.memory_space<vmem>>, vector<1x2x1x32xf32>
    %387 = vector.shape_cast %386 : vector<1x2x1x32xf32> to vector<2x32xf32>
    %c5_191 = arith.constant 5 : index
    %c0_192 = arith.constant 0 : index
    %c0_193 = arith.constant 0 : index
    %388 = vector.load %arg16[%c5_191, %c0_192, %c0_193] : memref<8x32x4xf32, #tpu.memory_space<vmem>>, vector<1x32x4xf32>
    %389 = vector.shape_cast %388 : vector<1x32x4xf32> to vector<32x4xf32>
    %cst_194 = arith.constant dense<0.000000e+00> : vector<2x4xf32>
    %390 = tpu.matmul %387, %389, %cst_194 {dimension_numbers = #tpu.dot_dimension_numbers<[1], [0], [0], [1], [0, 0, 1, 1], [], []>} : vector<2x32xf32>, vector<32x4xf32>, vector<2x4xf32> -> vector<2x4xf32>
    %391 = arith.addf %385, %390 : vector<2x4xf32>
    %c2_195 = arith.constant 2 : index
    %c0_196 = arith.constant 0 : index
    %c6 = arith.constant 6 : index
    %c0_197 = arith.constant 0 : index
    %392 = vector.load %arg18[%c2_195, %c0_196, %c6, %c0_197] : memref<3x2x8x32xf32, #tpu.memory_space<vmem>>, vector<1x2x1x32xf32>
    %393 = vector.shape_cast %392 : vector<1x2x1x32xf32> to vector<2x32xf32>
    %c6_198 = arith.constant 6 : index
    %c0_199 = arith.constant 0 : index
    %c0_200 = arith.constant 0 : index
    %394 = vector.load %arg16[%c6_198, %c0_199, %c0_200] : memref<8x32x4xf32, #tpu.memory_space<vmem>>, vector<1x32x4xf32>
    %395 = vector.shape_cast %394 : vector<1x32x4xf32> to vector<32x4xf32>
    %cst_201 = arith.constant dense<0.000000e+00> : vector<2x4xf32>
    %396 = tpu.matmul %393, %395, %cst_201 {dimension_numbers = #tpu.dot_dimension_numbers<[1], [0], [0], [1], [0, 0, 1, 1], [], []>} : vector<2x32xf32>, vector<32x4xf32>, vector<2x4xf32> -> vector<2x4xf32>
    %397 = arith.addf %391, %396 : vector<2x4xf32>
    %c2_202 = arith.constant 2 : index
    %c0_203 = arith.constant 0 : index
    %c7 = arith.constant 7 : index
    %c0_204 = arith.constant 0 : index
    %398 = vector.load %arg18[%c2_202, %c0_203, %c7, %c0_204] : memref<3x2x8x32xf32, #tpu.memory_space<vmem>>, vector<1x2x1x32xf32>
    %399 = vector.shape_cast %398 : vector<1x2x1x32xf32> to vector<2x32xf32>
    %c7_205 = arith.constant 7 : index
    %c0_206 = arith.constant 0 : index
    %c0_207 = arith.constant 0 : index
    %400 = vector.load %arg16[%c7_205, %c0_206, %c0_207] : memref<8x32x4xf32, #tpu.memory_space<vmem>>, vector<1x32x4xf32>
    %401 = vector.shape_cast %400 : vector<1x32x4xf32> to vector<32x4xf32>
    %cst_208 = arith.constant dense<0.000000e+00> : vector<2x4xf32>
    %402 = tpu.matmul %399, %401, %cst_208 {dimension_numbers = #tpu.dot_dimension_numbers<[1], [0], [0], [1], [0, 0, 1, 1], [], []>} : vector<2x32xf32>, vector<32x4xf32>, vector<2x4xf32> -> vector<2x4xf32>
    %403 = arith.addf %397, %402 : vector<2x4xf32>
    %c0_209 = arith.constant 0 : index
    %c0_210 = arith.constant 0 : index
    %404 = vector.load %arg19[%c0_209, %c0_210] : memref<2x4xf32, #tpu.memory_space<vmem>>, vector<2x4xf32>
    tpu.vector_store %arg19[%c0_209, %c0_210], %403 {strides = array<i32>} : memref<2x4xf32, #tpu.memory_space<vmem>>, vector<2x4xf32>,
    return
  }
}

</mosaic_0001>

<llo_original>
// kernel: tpu_custom_call.1
$region0: #{tpu_custom_call.1}
  #allocation0 [shape = 'u32[]', space=smem, size = 0x4, offset = 0x4, fixed_abs, tag = 'smem constant byte address 0x4 - core index']
  #allocation1 [shape = 'u32[72,128]{1,0:T(1,128)}', space=vmem, size = 0x9000, scoped, tag = 'internal scratch']
  #allocation2 [shape = 'f32[16,32]{1,0:T(8,128)}', space=vmem, size = 0x2000, scoped, tag = 'scratch operand']
  %s0 = inlined_call_operand.vmem [shape: f32[2,8,32], index: 0, kind: input, shape index: {}]
  %s1 = inlined_call_operand.vmem [shape: f32[2,8], index: 1, kind: input, shape index: {}]
  %s2 = inlined_call_operand.vmem [shape: f32[1,32], index: 2, kind: input, shape index: {}]
  %s3 = inlined_call_operand.vmem [shape: f32[1,32], index: 3, kind: input, shape index: {}]
  %s4 = inlined_call_operand.vmem [shape: f32[2,32,96], index: 4, kind: input, shape index: {}]
  %s5 = inlined_call_operand.vmem [shape: f32[2,96], index: 5, kind: input, shape index: {}]
  %s6 = inlined_call_operand.vmem [shape: f32[2,32,32], index: 6, kind: input, shape index: {}]
  %s7 = inlined_call_operand.vmem [shape: f32[2,32], index: 7, kind: input, shape index: {}]
  %s8 = inlined_call_operand.vmem [shape: f32[2,32], index: 8, kind: input, shape index: {}]
  %s9 = inlined_call_operand.vmem [shape: f32[2,32], index: 9, kind: input, shape index: {}]
  %s10 = inlined_call_operand.vmem [shape: f32[2,32,64], index: 10, kind: input, shape index: {}]
  %s11 = inlined_call_operand.vmem [shape: f32[2,64], index: 11, kind: input, shape index: {}]
  %s12 = inlined_call_operand.vmem [shape: f32[2,64,32], index: 12, kind: input, shape index: {}]
  %s13 = inlined_call_operand.vmem [shape: f32[2,32], index: 13, kind: input, shape index: {}]
  %s14 = inlined_call_operand.vmem [shape: f32[2,32], index: 14, kind: input, shape index: {}]
  %s15 = inlined_call_operand.vmem [shape: f32[2,32], index: 15, kind: input, shape index: {}]
  %s16 = inlined_call_operand.vmem [shape: f32[8,32,4], index: 16, kind: input, shape index: {}]
  %s17 = inlined_call_operand.vmem [shape: f32[1,4], index: 17, kind: input, shape index: {}]
  %s18 = inlined_call_operand.hbm [shape: f32[3,2,8,32], index: 18, kind: output, shape index: {0}]
  %s19 = inlined_call_operand.hbm [shape: f32[2,4], index: 19, kind: output, shape index: {1}]
  %20 = xla_tuple %s18, %s19
  %s21 = sld [smem:[#allocation0]]
  $region90: #{tpu_custom_call.1} parent=0
    _
  %s23 = ssub.s32 1, %s21
  %s24 = scalar_select 0, %s23, %s21
  $region1: #{tpu_custom_call.1} parent=0
    #allocation3 [shape = 'u8[24576]{0}', space=vmem, size = 0x6000, scoped, tag = 'output window, operand 0, single buffered']
    #allocation4 [shape = 's32[1]{0}', space=sflag, size = 0x4, scoped, tag = 'scoped memory for tpu_custom_call.1']
    #allocation5 [shape = 'u8[1024]{0}', space=vmem, size = 0x400, scoped, tag = 'output window, operand 1, single buffered']
    #allocation6 [shape = 's32[1]{0}', space=sflag, size = 0x4, scoped, tag = 'scoped memory for tpu_custom_call.1']
    %25 = vsyncpa [#allocation4], 0
    %26 = vsyncpa [#allocation6], 0
    // Predicated region
    $region2: #{tpu_custom_call.1} parent=1 // pred_check
      _
    $region3: #{tpu_custom_call.1} parent=1 // pred_check_branch
      %28 = sbr.rel (0) target = $region5
    $region4: #{tpu_custom_call.1} parent=1 // pred_region
      _
    $region5: #{tpu_custom_call.1} parent=1 // pred_fallthru
      _
    // Predicated region
    $region6: #{tpu_custom_call.1} parent=1 // pred_check
      _
    $region7: #{tpu_custom_call.1} parent=1 // pred_check_branch
      %30 = sbr.rel (0) target = $region9
    $region8: #{tpu_custom_call.1} parent=1 // pred_region
      _
    $region9: #{tpu_custom_call.1} parent=1 // pred_fallthru
      _
    // Predicated region
    $region10: #{tpu_custom_call.1} parent=1 // pred_check
      _
    $region11: #{tpu_custom_call.1} parent=1 // pred_check_branch
      %32 = sbr.rel (0) target = $region13
    $region12: #{tpu_custom_call.1} parent=1 // pred_region
      _
    $region13: #{tpu_custom_call.1} parent=1 // pred_fallthru
      _
    // Predicated region
    $region14: #{tpu_custom_call.1} parent=1 // pred_check
      _
    $region15: #{tpu_custom_call.1} parent=1 // pred_check_branch
      %34 = sbr.rel (0) target = $region17
    $region16: #{tpu_custom_call.1} parent=1 // pred_region
      _
    $region17: #{tpu_custom_call.1} parent=1 // pred_fallthru
      _
    // Predicated region
    $region18: #{tpu_custom_call.1} parent=1 // pred_check
      _
    $region19: #{tpu_custom_call.1} parent=1 // pred_check_branch
      %36 = sbr.rel (0) target = $region21
    $region20: #{tpu_custom_call.1} parent=1 // pred_region
      _
    $region21: #{tpu_custom_call.1} parent=1 // pred_fallthru
      _
    // Predicated region
    $region22: #{tpu_custom_call.1} parent=1 // pred_check
      _
    $region23: #{tpu_custom_call.1} parent=1 // pred_check_branch
      %38 = sbr.rel (0) target = $region25
    $region24: #{tpu_custom_call.1} parent=1 // pred_region
      _
    $region25: #{tpu_custom_call.1} parent=1 // pred_fallthru
      _
    // Predicated region
    $region26: #{tpu_custom_call.1} parent=1 // pred_check
      _
    $region27: #{tpu_custom_call.1} parent=1 // pred_check_branch
      %40 = sbr.rel (0) target = $region29
    $region28: #{tpu_custom_call.1} parent=1 // pred_region
      _
    $region29: #{tpu_custom_call.1} parent=1 // pred_fallthru
      _
    // Predicated region
    $region30: #{tpu_custom_call.1} parent=1 // pred_check
      _
    $region31: #{tpu_custom_call.1} parent=1 // pred_check_branch
      %42 = sbr.rel (0) target = $region33
    $region32: #{tpu_custom_call.1} parent=1 // pred_region
      _
    $region33: #{tpu_custom_call.1} parent=1 // pred_fallthru
      _
    // Predicated region
    $region34: #{tpu_custom_call.1} parent=1 // pred_check
      _
    $region35: #{tpu_custom_call.1} parent=1 // pred_check_branch
      %44 = sbr.rel (0) target = $region37
    $region36: #{tpu_custom_call.1} parent=1 // pred_region
      _
    $region37: #{tpu_custom_call.1} parent=1 // pred_fallthru
      _
    // Predicated region
    $region38: #{tpu_custom_call.1} parent=1 // pred_check
      _
    $region39: #{tpu_custom_call.1} parent=1 // pred_check_branch
      %46 = sbr.rel (0) target = $region41
    $region40: #{tpu_custom_call.1} parent=1 // pred_region
      _
    $region41: #{tpu_custom_call.1} parent=1 // pred_fallthru
      _
    // Predicated region
    $region42: #{tpu_custom_call.1} parent=1 // pred_check
      _
    $region43: #{tpu_custom_call.1} parent=1 // pred_check_branch
      %48 = sbr.rel (0) target = $region45
    $region44: #{tpu_custom_call.1} parent=1 // pred_region
      _
    $region45: #{tpu_custom_call.1} parent=1 // pred_fallthru
      _
    // Predicated region
    $region46: #{tpu_custom_call.1} parent=1 // pred_check
      _
    $region47: #{tpu_custom_call.1} parent=1 // pred_check_branch
      %50 = sbr.rel (0) target = $region49
    $region48: #{tpu_custom_call.1} parent=1 // pred_region
      _
    $region49: #{tpu_custom_call.1} parent=1 // pred_fallthru
      _
    // Predicated region
    $region50: #{tpu_custom_call.1} parent=1 // pred_check
      _
    $region51: #{tpu_custom_call.1} parent=1 // pred_check_branch
      %52 = sbr.rel (0) target = $region53
    $region52: #{tpu_custom_call.1} parent=1 // pred_region
      _
    $region53: #{tpu_custom_call.1} parent=1 // pred_fallthru
      _
    // Predicated region
    $region54: #{tpu_custom_call.1} parent=1 // pred_check
      _
    $region55: #{tpu_custom_call.1} parent=1 // pred_check_branch
      %54 = sbr.rel (0) target = $region57
    $region56: #{tpu_custom_call.1} parent=1 // pred_region
      _
    $region57: #{tpu_custom_call.1} parent=1 // pred_fallthru
      _
    // Predicated region
    $region58: #{tpu_custom_call.1} parent=1 // pred_check
      _
    $region59: #{tpu_custom_call.1} parent=1 // pred_check_branch
      %56 = sbr.rel (0) target = $region61
    $region60: #{tpu_custom_call.1} parent=1 // pred_region
      _
    $region61: #{tpu_custom_call.1} parent=1 // pred_fallthru
      _
    // Predicated region
    $region62: #{tpu_custom_call.1} parent=1 // pred_check
      _
    $region63: #{tpu_custom_call.1} parent=1 // pred_check_branch
      %58 = sbr.rel (0) target = $region65
    $region64: #{tpu_custom_call.1} parent=1 // pred_region
      _
    $region65: #{tpu_custom_call.1} parent=1 // pred_fallthru
      _
    // Predicated region
    $region66: #{tpu_custom_call.1} parent=1 // pred_check
      _
    $region67: #{tpu_custom_call.1} parent=1 // pred_check_branch
      %60 = sbr.rel (0) target = $region69
    $region68: #{tpu_custom_call.1} parent=1 // pred_region
      _
    $region69: #{tpu_custom_call.1} parent=1 // pred_fallthru
      _
    // Predicated region
    $region70: #{tpu_custom_call.1} parent=1 // pred_check
      _
    $region71: #{tpu_custom_call.1} parent=1 // pred_check_branch
      %62 = sbr.rel (0) target = $region73
    $region72: #{tpu_custom_call.1} parent=1 // pred_region
      _
    $region73: #{tpu_custom_call.1} parent=1 // pred_fallthru
      _
    %v63 = vld [vmem:[%s0] sm:$0xff]
    %v64 = vld [vmem:[%s0 + $0x8] sm:$0xff]
    %v65 = vld [vmem:[%s2] sm:$0x1]
    %v66 = vld [vmem:[%s3] sm:$0x1]
    %vm67 = vcmask 261120
    %v68 = vsel %vm67, %v63, 0.0
    %69 = vadd.xlane.f32.xlu0 %v68
    %v70 = vpop.xlane.xlu0 %69
    %v71 = vsel %vm67, %v64, 0.0
    %72 = vadd.xlane.f32.xlu0 %v71
    %v73 = vpop.xlane.xlu0 %72
    %v74 = vrcp.pop 32.0
    %v75 = vmul.f32 32.0, %v74
    %v76 = vsub.f32 1.0, %v75
    %v77 = vmul.f32 %v74, %v76
    %v78 = vadd.f32 %v74, %v77
    %vm79 = vweird.f32 %v74
    %v80 = vsel %vm79, %v74, %v78
    %v81 = vmul.f32 %v70, %v80
    %v82 = vmul.f32 %v73, %v80
    %v83 = vsub.f32 %v63, %v81
    %v84 = vsub.f32 %v64, %v82
    %v85 = vmul.f32 %v83, %v83
    %v86 = vmul.f32 %v84, %v84
    %v87 = vsel %vm67, %v85, 0.0
    %88 = vadd.xlane.f32.xlu0 %v87
    %v89 = vpop.xlane.xlu0 %88
    %v90 = vsel %vm67, %v86, 0.0
    %91 = vadd.xlane.f32.xlu0 %v90
    %v92 = vpop.xlane.xlu0 %91
    %v93 = vmul.f32 %v89, %v80
    %v94 = vmul.f32 %v92, %v80
    %v95 = vadd.f32 %v93, 1e-05
    %v96 = vadd.f32 %v94, 1e-05
    %v97 = vrsqrt.pop %v95
    %v98 = vmul.f32 %v97, %v95
    %v99 = vmul.f32 %v98, %v97
    %v100 = vmul.f32 0.5, %v99
    %v101 = vsub.f32 1.5, %v100
    %v102 = vmul.f32 %v97, %v101
    %vm103 = vweird.f32 %v95
    %vm104 = vweird.f32 %v97
    %vm105 = vmor %vm103, %vm104
    %v106 = vsel %vm105, %v97, %v102
    %v107 = vrsqrt.pop %v96
    %v108 = vmul.f32 %v107, %v96
    %v109 = vmul.f32 %v108, %v107
    %v110 = vmul.f32 0.5, %v109
    %v111 = vsub.f32 1.5, %v110
    %v112 = vmul.f32 %v107, %v111
    %vm113 = vweird.f32 %v96
    %vm114 = vweird.f32 %v107
    %vm115 = vmor %vm113, %vm114
    %v116 = vsel %vm115, %v107, %v112
    %v117 = vmul.f32 %v83, %v106
    %v118 = vmul.f32 %v84, %v116
    %v120 = vperm.slane %v65, 0
    %v122 = vmul.f32 %v117, %v120
    %v123 = vmul.f32 %v118, %v120
    %v125 = vperm.slane %v66, 0
    %v127 = vadd.f32 %v122, %v125
    %v128 = vadd.f32 %v123, %v125
    %129 = vst.msk [vmem:[#allocation3] sm:$0xff] %vm67, %v127
    %130 = vst.msk [vmem:[#allocation3 + $0x8] sm:$0xff] %vm67, %v128
    %v131 = vld [vmem:[%s1] sm:$0x3]
    %v132 = vsub.f32 1.0, %v131
    %v133 = vmul.f32 %v132, -1e+09
    %v135 = vrot.slane %v133, 1
    %v136 = vperm.slane %v133, 0
    %v137 = vperm.slane %v135, 0
    %v140 = vld [vmem:[%s4] sm:$0xff]
    %v141 = vld [vmem:[%s4 + $0x8] sm:$0xff]
    %v142 = vld [vmem:[%s4 + $0x10] sm:$0xff]
    %v143 = vld [vmem:[%s4 + $0x18] sm:$0xff]
    %v144 = vld [vmem:[%s5] sm:$0x1]
    %v145 = vperm.slane %v144, 0
    %v147 = vsel %vm67, %v127, 0
    %v150 = vsel %vm67, %v128, 0
    %152 = vmatpush.msra.mxu0 0.0
    %153 = vmatpush.msra.mxu0 0.0
    %154 = vmatpush.msra.mxu0 0.0
    %155 = vmatpush.msra.mxu0 0.0
    %156 = vmatpush.msra.mxu0 0.0
    %157 = vmatpush.msra.mxu0 0.0
    %158 = vmatpush.msra.mxu0 0.0
    %159 = vmatpush.msra.mxu0 0.0
    %160 = vmatpush.msra.mxu0 0.0
    %161 = vmatpush.msra.mxu0 0.0
    %162 = vmatpush.msra.mxu0 0.0
    %163 = vmatpush.msra.mxu0 0.0
    %164 = vmatpush.msra.mxu0 %v143
    %165 = vmatpush.msra.mxu0 %v142
    %166 = vmatpush.msra.mxu0 %v141
    %167 = vmatpush.msra.mxu0 %v140
    %168 = vmatmul.f32.gmra.mxu0 %v147
    %v169 = vpop.f32.mrf.mxu0
    %v170 = vadd.f32 %v145, %v169
    %171 = vmatmul.f32.gmra.mxu0 %v150
    %v172 = vpop.f32.mrf.mxu0
    %v173 = vadd.f32 %v145, %v172
    %174 = vdwg.mxu0
    %176 = vrot.lane.b32.xlu0 %v170, 96
    %v177 = vpop.permute.xlu0 %176
    %vm178 = vcmask 130048
    %v179 = vsel %vm178, %v170, 0
    %v181 = vsel %vm178, %v177, 0
    %183 = vmatpush.xpose.msra.mxu0 0.0
    %184 = vmatpush.xpose.msra.mxu0 0.0
    %185 = vmatpush.xpose.msra.mxu0 0.0
    %186 = vmatpush.xpose.msra.mxu0 0.0
    %187 = vmatpush.xpose.msra.mxu0 0.0
    %188 = vmatpush.xpose.msra.mxu0 0.0
    %189 = vmatpush.xpose.msra.mxu0 0.0
    %190 = vmatpush.xpose.msra.mxu0 0.0
    %191 = vmatpush.xpose.msra.mxu0 0.0
    %192 = vmatpush.xpose.msra.mxu0 0.0
    %193 = vmatpush.xpose.msra.mxu0 0.0
    %194 = vmatpush.xpose.msra.mxu0 0.0
    %195 = vmatpush.xpose.msra.mxu0 0.0
    %196 = vmatpush.xpose.msra.mxu0 0.0
    %197 = vmatpush.xpose.msra.mxu0 0.0
    %198 = vmatpush.xpose.msra.mxu0 %v181
    %199 = vmatmul.f32.gmra.mxu0 %v179
    %v200 = vpop.f32.mrf.mxu0
    %v201 = vadd.f32 0.0, %v200
    %202 = vdwg.mxu0
    %204 = vrot.lane.b32.xlu0 %v173, 96
    %v205 = vpop.permute.xlu0 %204
    %v206 = vsel %vm178, %v173, 0
    %v208 = vsel %vm178, %v205, 0
    %210 = vmatpush.xpose.msra.mxu0 0.0
    %211 = vmatpush.xpose.msra.mxu0 0.0
    %212 = vmatpush.xpose.msra.mxu0 0.0
    %213 = vmatpush.xpose.msra.mxu0 0.0
    %214 = vmatpush.xpose.msra.mxu0 0.0
    %215 = vmatpush.xpose.msra.mxu0 0.0
    %216 = vmatpush.xpose.msra.mxu0 0.0
    %217 = vmatpush.xpose.msra.mxu0 0.0
    %218 = vmatpush.xpose.msra.mxu0 0.0
    %219 = vmatpush.xpose.msra.mxu0 0.0
    %220 = vmatpush.xpose.msra.mxu0 0.0
    %221 = vmatpush.xpose.msra.mxu0 0.0
    %222 = vmatpush.xpose.msra.mxu0 0.0
    %223 = vmatpush.xpose.msra.mxu0 0.0
    %224 = vmatpush.xpose.msra.mxu0 0.0
    %225 = vmatpush.xpose.msra.mxu0 %v208
    %226 = vmatmul.f32.gmra.mxu0 %v206
    %v227 = vpop.f32.mrf.mxu0
    %v228 = vadd.f32 0.0, %v227
    %229 = vdwg.mxu0
    %v230 = vmul.f32 %v201, 0.25
    %v231 = vmul.f32 %v228, 0.25
    %v232 = vadd.f32 %v230, %v136
    %v233 = vadd.f32 %v231, %v137
    %vm234 = vcmask 64512
    %v235 = vsel %vm234, %v232, -inf
    %236 = vmax.xlane.f32.xlu0 %v235
    %v237 = vpop.xlane.xlu0 %236
    %v238 = vsel %vm234, %v233, -inf
    %239 = vmax.xlane.f32.xlu0 %v238
    %v240 = vpop.xlane.xlu0 %239
    %v241 = vsub.f32 %v232, %v237
    %v242 = vsub.f32 %v233, %v240
    %v243 = vmul.f32 %v241, 1.442695
    %v244 = vpow.pop %v243
    %v245 = vmul.f32 %v242, 1.442695
    %v246 = vpow.pop %v245
    %v247 = vsel %vm234, %v244, 0.0
    %248 = vadd.xlane.f32.xlu0 %v247
    %v249 = vpop.xlane.xlu0 %248
    %v250 = vsel %vm234, %v246, 0.0
    %251 = vadd.xlane.f32.xlu0 %v250
    %v252 = vpop.xlane.xlu0 %251
    %v253 = vrcp.pop %v249
    %v254 = vrcp.pop %v252
    %v255 = vmul.f32 %v244, %v253
    %v256 = vmul.f32 %v246, %v254
    %257 = vrot.lane.b32.xlu0 %v170, 64
    %v258 = vpop.permute.xlu0 %257
    %v261 = vsel %vm234, %v255, 0
    %263 = vmatpush.msra.mxu0 0.0
    %264 = vmatpush.msra.mxu0 0.0
    %265 = vmatpush.msra.mxu0 0.0
    %266 = vmatpush.msra.mxu0 0.0
    %267 = vmatpush.msra.mxu0 0.0
    %268 = vmatpush.msra.mxu0 0.0
    %269 = vmatpush.msra.mxu0 0.0
    %270 = vmatpush.msra.mxu0 0.0
    %271 = vmatpush.msra.mxu0 0.0
    %272 = vmatpush.msra.mxu0 0.0
    %273 = vmatpush.msra.mxu0 0.0
    %274 = vmatpush.msra.mxu0 0.0
    %275 = vmatpush.msra.mxu0 0.0
    %276 = vmatpush.msra.mxu0 0.0
    %277 = vmatpush.msra.mxu0 0.0
    %278 = vmatpush.msra.mxu0 %v258
    %279 = vmatmul.f32.gmra.mxu0 %v261
    %v280 = vpop.f32.mrf.mxu0
    %v281 = vadd.f32 0.0, %v280
    %282 = vdwg.mxu0
    %283 = vrot.lane.b32.xlu0 %v173, 64
    %v284 = vpop.permute.xlu0 %283
    %v287 = vsel %vm234, %v256, 0
    %289 = vmatpush.msra.mxu0 0.0
    %290 = vmatpush.msra.mxu0 0.0
    %291 = vmatpush.msra.mxu0 0.0
    %292 = vmatpush.msra.mxu0 0.0
    %293 = vmatpush.msra.mxu0 0.0
    %294 = vmatpush.msra.mxu0 0.0
    %295 = vmatpush.msra.mxu0 0.0
    %296 = vmatpush.msra.mxu0 0.0
    %297 = vmatpush.msra.mxu0 0.0
    %298 = vmatpush.msra.mxu0 0.0
    %299 = vmatpush.msra.mxu0 0.0
    %300 = vmatpush.msra.mxu0 0.0
    %301 = vmatpush.msra.mxu0 0.0
    %302 = vmatpush.msra.mxu0 0.0
    %303 = vmatpush.msra.mxu0 0.0
    %304 = vmatpush.msra.mxu0 %v284
    %305 = vmatmul.f32.gmra.mxu0 %v287
    %v306 = vpop.f32.mrf.mxu0
    %v307 = vadd.f32 0.0, %v306
    %308 = vdwg.mxu0
    %309 = vst.msk [vmem:[#allocation2] sm:$0xff] %vm178, %v281
    %310 = vst.msk [vmem:[#allocation2 + $0x8] sm:$0xff] %vm178, %v307
    %311 = vrot.lane.b32.xlu0 %v170, 112
    %v312 = vpop.permute.xlu0 %311
    %313 = vrot.lane.b32.xlu0 %v170, 80
    %v314 = vpop.permute.xlu0 %313
    %v315 = vsel %vm178, %v312, 0
    %v317 = vsel %vm178, %v314, 0
    %319 = vmatpush.xpose.msra.mxu0 0.0
    %320 = vmatpush.xpose.msra.mxu0 0.0
    %321 = vmatpush.xpose.msra.mxu0 0.0
    %322 = vmatpush.xpose.msra.mxu0 0.0
    %323 = vmatpush.xpose.msra.mxu0 0.0
    %324 = vmatpush.xpose.msra.mxu0 0.0
    %325 = vmatpush.xpose.msra.mxu0 0.0
    %326 = vmatpush.xpose.msra.mxu0 0.0
    %327 = vmatpush.xpose.msra.mxu0 0.0
    %328 = vmatpush.xpose.msra.mxu0 0.0
    %329 = vmatpush.xpose.msra.mxu0 0.0
    %330 = vmatpush.xpose.msra.mxu0 0.0
    %331 = vmatpush.xpose.msra.mxu0 0.0
    %332 = vmatpush.xpose.msra.mxu0 0.0
    %333 = vmatpush.xpose.msra.mxu0 0.0
    %334 = vmatpush.xpose.msra.mxu0 %v317
    %335 = vmatmul.f32.gmra.mxu0 %v315
    %v336 = vpop.f32.mrf.mxu0
    %v337 = vadd.f32 0.0, %v336
    %338 = vdwg.mxu0
    %339 = vrot.lane.b32.xlu0 %v173, 112
    %v340 = vpop.permute.xlu0 %339
    %341 = vrot.lane.b32.xlu0 %v173, 80
    %v342 = vpop.permute.xlu0 %341
    %v343 = vsel %vm178, %v340, 0
    %v345 = vsel %vm178, %v342, 0
    %347 = vmatpush.xpose.msra.mxu0 0.0
    %348 = vmatpush.xpose.msra.mxu0 0.0
    %349 = vmatpush.xpose.msra.mxu0 0.0
    %350 = vmatpush.xpose.msra.mxu0 0.0
    %351 = vmatpush.xpose.msra.mxu0 0.0
    %352 = vmatpush.xpose.msra.mxu0 0.0
    %353 = vmatpush.xpose.msra.mxu0 0.0
    %354 = vmatpush.xpose.msra.mxu0 0.0
    %355 = vmatpush.xpose.msra.mxu0 0.0
    %356 = vmatpush.xpose.msra.mxu0 0.0
    %357 = vmatpush.xpose.msra.mxu0 0.0
    %358 = vmatpush.xpose.msra.mxu0 0.0
    %359 = vmatpush.xpose.msra.mxu0 0.0
    %360 = vmatpush.xpose.msra.mxu0 0.0
    %361 = vmatpush.xpose.msra.mxu0 0.0
    %362 = vmatpush.xpose.msra.mxu0 %v345
    %363 = vmatmul.f32.gmra.mxu0 %v343
    %v364 = vpop.f32.mrf.mxu0
    %v365 = vadd.f32 0.0, %v364
    %366 = vdwg.mxu0
    %v367 = vmul.f32 %v337, 0.25
    %v368 = vmul.f32 %v365, 0.25
    %v369 = vadd.f32 %v367, %v136
    %v370 = vadd.f32 %v368, %v137
    %v371 = vsel %vm234, %v369, -inf
    %372 = vmax.xlane.f32.xlu0 %v371
    %v373 = vpop.xlane.xlu0 %372
    %v374 = vsel %vm234, %v370, -inf
    %375 = vmax.xlane.f32.xlu0 %v374
    %v376 = vpop.xlane.xlu0 %375
    %v377 = vsub.f32 %v369, %v373
    %v378 = vsub.f32 %v370, %v376
    %v379 = vmul.f32 %v377, 1.442695
    %v380 = vpow.pop %v379
    %v381 = vmul.f32 %v378, 1.442695
    %v382 = vpow.pop %v381
    %v383 = vsel %vm234, %v380, 0.0
    %384 = vadd.xlane.f32.xlu0 %v383
    %v385 = vpop.xlane.xlu0 %384
    %v386 = vsel %vm234, %v382, 0.0
    %387 = vadd.xlane.f32.xlu0 %v386
    %v388 = vpop.xlane.xlu0 %387
    %v389 = vrcp.pop %v385
    %v390 = vrcp.pop %v388
    %v391 = vmul.f32 %v380, %v389
    %v392 = vmul.f32 %v382, %v390
    %393 = vrot.lane.b32.xlu0 %v170, 48
    %v394 = vpop.permute.xlu0 %393
    %v397 = vsel %vm234, %v391, 0
    %399 = vmatpush.msra.mxu0 0.0
    %400 = vmatpush.msra.mxu0 0.0
    %401 = vmatpush.msra.mxu0 0.0
    %402 = vmatpush.msra.mxu0 0.0
    %403 = vmatpush.msra.mxu0 0.0
    %404 = vmatpush.msra.mxu0 0.0
    %405 = vmatpush.msra.mxu0 0.0
    %406 = vmatpush.msra.mxu0 0.0
    %407 = vmatpush.msra.mxu0 0.0
    %408 = vmatpush.msra.mxu0 0.0
    %409 = vmatpush.msra.mxu0 0.0
    %410 = vmatpush.msra.mxu0 0.0
    %411 = vmatpush.msra.mxu0 0.0
    %412 = vmatpush.msra.mxu0 0.0
    %413 = vmatpush.msra.mxu0 0.0
    %414 = vmatpush.msra.mxu0 %v394
    %415 = vmatmul.f32.gmra.mxu0 %v397
    %v416 = vpop.f32.mrf.mxu0
    %v417 = vadd.f32 0.0, %v416
    %418 = vdwg.mxu0
    %419 = vrot.lane.b32.xlu0 %v173, 48
    %v420 = vpop.permute.xlu0 %419
    %v423 = vsel %vm234, %v392, 0
    %425 = vmatpush.msra.mxu0 0.0
    %426 = vmatpush.msra.mxu0 0.0
    %427 = vmatpush.msra.mxu0 0.0
    %428 = vmatpush.msra.mxu0 0.0
    %429 = vmatpush.msra.mxu0 0.0
    %430 = vmatpush.msra.mxu0 0.0
    %431 = vmatpush.msra.mxu0 0.0
    %432 = vmatpush.msra.mxu0 0.0
    %433 = vmatpush.msra.mxu0 0.0
    %434 = vmatpush.msra.mxu0 0.0
    %435 = vmatpush.msra.mxu0 0.0
    %436 = vmatpush.msra.mxu0 0.0
    %437 = vmatpush.msra.mxu0 0.0
    %438 = vmatpush.msra.mxu0 0.0
    %439 = vmatpush.msra.mxu0 0.0
    %440 = vmatpush.msra.mxu0 %v420
    %441 = vmatmul.f32.gmra.mxu0 %v423
    %v442 = vpop.f32.mrf.mxu0
    %v443 = vadd.f32 0.0, %v442
    %444 = vdwg.mxu0
    %447 = vrot.lane.b32.xlu0 %v417, 16
    %v448 = vpop.permute.xlu0 %447
    %449 = vrot.lane.b32.xlu0 %v443, 16
    %v450 = vpop.permute.xlu0 %449
    %vm453 = vcmask 261248
    %454 = vst.msk [vmem:[#allocation2] sm:$0xff] %vm453, %v448
    %455 = vst.msk [vmem:[#allocation2 + $0x8] sm:$0xff] %vm453, %v450
    %v456 = vld [vmem:[#allocation2] sm:$0xff]
    %v457 = vld [vmem:[#allocation2 + $0x8] sm:$0xff]
    %v458 = vld [vmem:[%s6] sm:$0xff]
    %v459 = vld [vmem:[%s6 + $0x8] sm:$0xff]
    %v460 = vld [vmem:[%s6 + $0x10] sm:$0xff]
    %v461 = vld [vmem:[%s6 + $0x18] sm:$0xff]
    %v462 = vld [vmem:[%s7] sm:$0x1]
    %v463 = vperm.slane %v462, 0
    %v465 = vsel %vm67, %v456, 0
    %v468 = vsel %vm67, %v457, 0
    %470 = vmatpush.msra.mxu0 0.0
    %471 = vmatpush.msra.mxu0 0.0
    %472 = vmatpush.msra.mxu0 0.0
    %473 = vmatpush.msra.mxu0 0.0
    %474 = vmatpush.msra.mxu0 0.0
    %475 = vmatpush.msra.mxu0 0.0
    %476 = vmatpush.msra.mxu0 0.0
    %477 = vmatpush.msra.mxu0 0.0
    %478 = vmatpush.msra.mxu0 0.0
    %479 = vmatpush.msra.mxu0 0.0
    %480 = vmatpush.msra.mxu0 0.0
    %481 = vmatpush.msra.mxu0 0.0
    %482 = vmatpush.msra.mxu0 %v461
    %483 = vmatpush.msra.mxu0 %v460
    %484 = vmatpush.msra.mxu0 %v459
    %485 = vmatpush.msra.mxu0 %v458
    %486 = vmatmul.f32.gmra.mxu0 %v465
    %v487 = vpop.f32.mrf.mxu0
    %v488 = vadd.f32 %v463, %v487
    %489 = vmatmul.f32.gmra.mxu0 %v468
    %v490 = vpop.f32.mrf.mxu0
    %v491 = vadd.f32 %v463, %v490
    %492 = vdwg.mxu0
    %v493 = vadd.f32 %v127, %v488
    %v494 = vadd.f32 %v128, %v491
    %v495 = vld [vmem:[%s8] sm:$0x1]
    %v496 = vld [vmem:[%s9] sm:$0x1]
    %v497 = vsel %vm67, %v493, 0.0
    %498 = vadd.xlane.f32.xlu0 %v497
    %v499 = vpop.xlane.xlu0 %498
    %v500 = vsel %vm67, %v494, 0.0
    %501 = vadd.xlane.f32.xlu0 %v500
    %v502 = vpop.xlane.xlu0 %501
    %v503 = vmul.f32 %v499, %v80
    %v504 = vmul.f32 %v502, %v80
    %v505 = vsub.f32 %v493, %v503
    %v506 = vsub.f32 %v494, %v504
    %v507 = vmul.f32 %v505, %v505
    %v508 = vmul.f32 %v506, %v506
    %v509 = vsel %vm67, %v507, 0.0
    %510 = vadd.xlane.f32.xlu0 %v509
    %v511 = vpop.xlane.xlu0 %510
    %v512 = vsel %vm67, %v508, 0.0
    %513 = vadd.xlane.f32.xlu0 %v512
    %v514 = vpop.xlane.xlu0 %513
    %v515 = vmul.f32 %v511, %v80
    %v516 = vmul.f32 %v514, %v80
    %v517 = vadd.f32 %v515, 1e-05
    %v518 = vadd.f32 %v516, 1e-05
    %v519 = vrsqrt.pop %v517
    %v520 = vmul.f32 %v519, %v517
    %v521 = vmul.f32 %v520, %v519
    %v522 = vmul.f32 0.5, %v521
    %v523 = vsub.f32 1.5, %v522
    %v524 = vmul.f32 %v519, %v523
    %vm525 = vweird.f32 %v517
    %vm526 = vweird.f32 %v519
    %vm527 = vmor %vm525, %vm526
    %v528 = vsel %vm527, %v519, %v524
    %v529 = vrsqrt.pop %v518
    %v530 = vmul.f32 %v529, %v518
    %v531 = vmul.f32 %v530, %v529
    %v532 = vmul.f32 0.5, %v531
    %v533 = vsub.f32 1.5, %v532
    %v534 = vmul.f32 %v529, %v533
    %vm535 = vweird.f32 %v518
    %vm536 = vweird.f32 %v529
    %vm537 = vmor %vm535, %vm536
    %v538 = vsel %vm537, %v529, %v534
    %v539 = vmul.f32 %v505, %v528
    %v540 = vmul.f32 %v506, %v538
    %v541 = vperm.slane %v495, 0
    %v542 = vmul.f32 %v539, %v541
    %v543 = vmul.f32 %v540, %v541
    %v544 = vperm.slane %v496, 0
    %v545 = vadd.f32 %v542, %v544
    %v546 = vadd.f32 %v543, %v544
    %v547 = vld [vmem:[%s10] sm:$0xff]
    %v548 = vld [vmem:[%s10 + $0x8] sm:$0xff]
    %v549 = vld [vmem:[%s10 + $0x10] sm:$0xff]
    %v550 = vld [vmem:[%s10 + $0x18] sm:$0xff]
    %v551 = vld [vmem:[%s11] sm:$0x1]
    %v552 = vperm.slane %v551, 0
    %v554 = vsel %vm67, %v545, 0
    %v557 = vsel %vm67, %v546, 0
    %559 = vmatpush.msra.mxu0 0.0
    %560 = vmatpush.msra.mxu0 0.0
    %561 = vmatpush.msra.mxu0 0.0
    %562 = vmatpush.msra.mxu0 0.0
    %563 = vmatpush.msra.mxu0 0.0
    %564 = vmatpush.msra.mxu0 0.0
    %565 = vmatpush.msra.mxu0 0.0
    %566 = vmatpush.msra.mxu0 0.0
    %567 = vmatpush.msra.mxu0 0.0
    %568 = vmatpush.msra.mxu0 0.0
    %569 = vmatpush.msra.mxu0 0.0
    %570 = vmatpush.msra.mxu0 0.0
    %571 = vmatpush.msra.mxu0 %v550
    %572 = vmatpush.msra.mxu0 %v549
    %573 = vmatpush.msra.mxu0 %v548
    %574 = vmatpush.msra.mxu0 %v547
    %575 = vmatmul.f32.gmra.mxu0 %v554
    %v576 = vpop.f32.mrf.mxu0
    %v577 = vadd.f32 %v552, %v576
    %578 = vmatmul.f32.gmra.mxu0 %v557
    %v579 = vpop.f32.mrf.mxu0
    %v580 = vadd.f32 %v552, %v579
    %581 = vdwg.mxu0
    %v582 = vmul.f32 %v577, 0.5
    %v583 = vmul.f32 %v580, 0.5
    %v584 = vmul.f32 %v577, 0.044715
    %v585 = vmul.f32 %v580, 0.044715
    %v586 = vmul.f32 %v584, %v577
    %v587 = vmul.f32 %v585, %v580
    %v588 = vmul.f32 %v586, %v577
    %v589 = vmul.f32 %v587, %v580
    %v590 = vadd.f32 %v577, %v588
    %v591 = vadd.f32 %v580, %v589
    %v592 = vmul.f32 %v590, 0.7978846
    %v593 = vmul.f32 %v591, 0.7978846
    %v594 = vtanh.pop %v592
    %v595 = vtanh.pop %v593
    %v596 = vadd.f32 %v594, 1.0
    %v597 = vadd.f32 %v595, 1.0
    %v598 = vmul.f32 %v582, %v596
    %v599 = vmul.f32 %v583, %v597
    %v600 = vld [vmem:[%s12] sm:$0xff]
    %v601 = vld [vmem:[%s12 + $0x8] sm:$0xff]
    %v602 = vld [vmem:[%s12 + $0x10] sm:$0xff]
    %v603 = vld [vmem:[%s12 + $0x18] sm:$0xff]
    %v604 = vld [vmem:[%s12 + $0x20] sm:$0xff]
    %v605 = vld [vmem:[%s12 + $0x28] sm:$0xff]
    %v606 = vld [vmem:[%s12 + $0x30] sm:$0xff]
    %v607 = vld [vmem:[%s12 + $0x38] sm:$0xff]
    %v608 = vld [vmem:[%s13] sm:$0x1]
    %v609 = vperm.slane %v608, 0
    %vm610 = vcmask 523264
    %v612 = vsel %vm610, %v598, 0
    %v615 = vsel %vm610, %v599, 0
    %617 = vmatpush.msra.mxu0 0.0
    %618 = vmatpush.msra.mxu0 0.0
    %619 = vmatpush.msra.mxu0 0.0
    %620 = vmatpush.msra.mxu0 0.0
    %621 = vmatpush.msra.mxu0 0.0
    %622 = vmatpush.msra.mxu0 0.0
    %623 = vmatpush.msra.mxu0 0.0
    %624 = vmatpush.msra.mxu0 0.0
    %625 = vmatpush.msra.mxu0 %v607
    %626 = vmatpush.msra.mxu0 %v606
    %627 = vmatpush.msra.mxu0 %v605
    %628 = vmatpush.msra.mxu0 %v604
    %629 = vmatpush.msra.mxu0 %v603
    %630 = vmatpush.msra.mxu0 %v602
    %631 = vmatpush.msra.mxu0 %v601
    %632 = vmatpush.msra.mxu0 %v600
    %633 = vmatmul.f32.gmra.mxu0 %v612
    %v634 = vpop.f32.mrf.mxu0
    %v635 = vadd.f32 %v609, %v634
    %636 = vmatmul.f32.gmra.mxu0 %v615
    %v637 = vpop.f32.mrf.mxu0
    %v638 = vadd.f32 %v609, %v637
    %639 = vdwg.mxu0
    %v640 = vadd.f32 %v545, %v635
    %v641 = vadd.f32 %v546, %v638
    %v642 = vld [vmem:[%s14] sm:$0x1]
    %v643 = vld [vmem:[%s15] sm:$0x1]
    %v644 = vsel %vm67, %v640, 0.0
    %645 = vadd.xlane.f32.xlu0 %v644
    %v646 = vpop.xlane.xlu0 %645
    %v647 = vsel %vm67, %v641, 0.0
    %648 = vadd.xlane.f32.xlu0 %v647
    %v649 = vpop.xlane.xlu0 %648
    %v650 = vmul.f32 %v646, %v80
    %v651 = vmul.f32 %v649, %v80
    %v652 = vsub.f32 %v640, %v650
    %v653 = vsub.f32 %v641, %v651
    %v654 = vmul.f32 %v652, %v652
    %v655 = vmul.f32 %v653, %v653
    %v656 = vsel %vm67, %v654, 0.0
    %657 = vadd.xlane.f32.xlu0 %v656
    %v658 = vpop.xlane.xlu0 %657
    %v659 = vsel %vm67, %v655, 0.0
    %660 = vadd.xlane.f32.xlu0 %v659
    %v661 = vpop.xlane.xlu0 %660
    %v662 = vmul.f32 %v658, %v80
    %v663 = vmul.f32 %v661, %v80
    %v664 = vadd.f32 %v662, 1e-05
    %v665 = vadd.f32 %v663, 1e-05
    %v666 = vrsqrt.pop %v664
    %v667 = vmul.f32 %v666, %v664
    %v668 = vmul.f32 %v667, %v666
    %v669 = vmul.f32 0.5, %v668
    %v670 = vsub.f32 1.5, %v669
    %v671 = vmul.f32 %v666, %v670
    %vm672 = vweird.f32 %v664
    %vm673 = vweird.f32 %v666
    %vm674 = vmor %vm672, %vm673
    %v675 = vsel %vm674, %v666, %v671
    %v676 = vrsqrt.pop %v665
    %v677 = vmul.f32 %v676, %v665
    %v678 = vmul.f32 %v677, %v676
    %v679 = vmul.f32 0.5, %v678
    %v680 = vsub.f32 1.5, %v679
    %v681 = vmul.f32 %v676, %v680
    %vm682 = vweird.f32 %v665
    %vm683 = vweird.f32 %v676
    %vm684 = vmor %vm682, %vm683
    %v685 = vsel %vm684, %v676, %v681
    %v686 = vmul.f32 %v652, %v675
    %v687 = vmul.f32 %v653, %v685
    %v688 = vperm.slane %v642, 0
    %v689 = vmul.f32 %v686, %v688
    %v690 = vmul.f32 %v687, %v688
    %v691 = vperm.slane %v643, 0
    %v692 = vadd.f32 %v689, %v691
    %v693 = vadd.f32 %v690, %v691
    %s694 = scalar_lea.vmem [#allocation3], 16
    %695 = vst.msk [vmem:[%s694] sm:$0xff] %vm67, %v692
    %696 = vst.msk [vmem:[%s694 + $0x8] sm:$0xff] %vm67, %v693
    %s697 = scalar_lea.vmem %s4, 32
    %v698 = vld [vmem:[%s697] sm:$0xff]
    %v699 = vld [vmem:[%s697 + $0x8] sm:$0xff]
    %v700 = vld [vmem:[%s697 + $0x10] sm:$0xff]
    %v701 = vld [vmem:[%s697 + $0x18] sm:$0xff]
    %v702 = vld [vmem:[%s5 + $0x1] sm:$0x1]
    %v703 = vperm.slane %v702, 0
    %v705 = vsel %vm67, %v692, 0
    %v708 = vsel %vm67, %v693, 0
    %710 = vmatpush.msra.mxu0 0.0
    %711 = vmatpush.msra.mxu0 0.0
    %712 = vmatpush.msra.mxu0 0.0
    %713 = vmatpush.msra.mxu0 0.0
    %714 = vmatpush.msra.mxu0 0.0
    %715 = vmatpush.msra.mxu0 0.0
    %716 = vmatpush.msra.mxu0 0.0
    %717 = vmatpush.msra.mxu0 0.0
    %718 = vmatpush.msra.mxu0 0.0
    %719 = vmatpush.msra.mxu0 0.0
    %720 = vmatpush.msra.mxu0 0.0
    %721 = vmatpush.msra.mxu0 0.0
    %722 = vmatpush.msra.mxu0 %v701
    %723 = vmatpush.msra.mxu0 %v700
    %724 = vmatpush.msra.mxu0 %v699
    %725 = vmatpush.msra.mxu0 %v698
    %726 = vmatmul.f32.gmra.mxu0 %v705
    %v727 = vpop.f32.mrf.mxu0
    %v728 = vadd.f32 %v703, %v727
    %729 = vmatmul.f32.gmra.mxu0 %v708
    %v730 = vpop.f32.mrf.mxu0
    %v731 = vadd.f32 %v703, %v730
    %732 = vdwg.mxu0
    %734 = vrot.lane.b32.xlu0 %v728, 96
    %v735 = vpop.permute.xlu0 %734
    %v736 = vsel %vm178, %v728, 0
    %v738 = vsel %vm178, %v735, 0
    %740 = vmatpush.xpose.msra.mxu0 0.0
    %741 = vmatpush.xpose.msra.mxu0 0.0
    %742 = vmatpush.xpose.msra.mxu0 0.0
    %743 = vmatpush.xpose.msra.mxu0 0.0
    %744 = vmatpush.xpose.msra.mxu0 0.0
    %745 = vmatpush.xpose.msra.mxu0 0.0
    %746 = vmatpush.xpose.msra.mxu0 0.0
    %747 = vmatpush.xpose.msra.mxu0 0.0
    %748 = vmatpush.xpose.msra.mxu0 0.0
    %749 = vmatpush.xpose.msra.mxu0 0.0
    %750 = vmatpush.xpose.msra.mxu0 0.0
    %751 = vmatpush.xpose.msra.mxu0 0.0
    %752 = vmatpush.xpose.msra.mxu0 0.0
    %753 = vmatpush.xpose.msra.mxu0 0.0
    %754 = vmatpush.xpose.msra.mxu0 0.0
    %755 = vmatpush.xpose.msra.mxu0 %v738
    %756 = vmatmul.f32.gmra.mxu0 %v736
    %v757 = vpop.f32.mrf.mxu0
    %v758 = vadd.f32 0.0, %v757
    %759 = vdwg.mxu0
    %761 = vrot.lane.b32.xlu0 %v731, 96
    %v762 = vpop.permute.xlu0 %761
    %v763 = vsel %vm178, %v731, 0
    %v765 = vsel %vm178, %v762, 0
    %767 = vmatpush.xpose.msra.mxu0 0.0
    %768 = vmatpush.xpose.msra.mxu0 0.0
    %769 = vmatpush.xpose.msra.mxu0 0.0
    %770 = vmatpush.xpose.msra.mxu0 0.0
    %771 = vmatpush.xpose.msra.mxu0 0.0
    %772 = vmatpush.xpose.msra.mxu0 0.0
    %773 = vmatpush.xpose.msra.mxu0 0.0
    %774 = vmatpush.xpose.msra.mxu0 0.0
    %775 = vmatpush.xpose.msra.mxu0 0.0
    %776 = vmatpush.xpose.msra.mxu0 0.0
    %777 = vmatpush.xpose.msra.mxu0 0.0
    %778 = vmatpush.xpose.msra.mxu0 0.0
    %779 = vmatpush.xpose.msra.mxu0 0.0
    %780 = vmatpush.xpose.msra.mxu0 0.0
    %781 = vmatpush.xpose.msra.mxu0 0.0
    %782 = vmatpush.xpose.msra.mxu0 %v765
    %783 = vmatmul.f32.gmra.mxu0 %v763
    %v784 = vpop.f32.mrf.mxu0
    %v785 = vadd.f32 0.0, %v784
    %786 = vdwg.mxu0
    %v787 = vmul.f32 %v758, 0.25
    %v788 = vmul.f32 %v785, 0.25
    %v789 = vadd.f32 %v787, %v136
    %v790 = vadd.f32 %v788, %v137
    %v791 = vsel %vm234, %v789, -inf
    %792 = vmax.xlane.f32.xlu0 %v791
    %v793 = vpop.xlane.xlu0 %792
    %v794 = vsel %vm234, %v790, -inf
    %795 = vmax.xlane.f32.xlu0 %v794
    %v796 = vpop.xlane.xlu0 %795
    %v797 = vsub.f32 %v789, %v793
    %v798 = vsub.f32 %v790, %v796
    %v799 = vmul.f32 %v797, 1.442695
    %v800 = vpow.pop %v799
    %v801 = vmul.f32 %v798, 1.442695
    %v802 = vpow.pop %v801
    %v803 = vsel %vm234, %v800, 0.0
    %804 = vadd.xlane.f32.xlu0 %v803
    %v805 = vpop.xlane.xlu0 %804
    %v806 = vsel %vm234, %v802, 0.0
    %807 = vadd.xlane.f32.xlu0 %v806
    %v808 = vpop.xlane.xlu0 %807
    %v809 = vrcp.pop %v805
    %v810 = vrcp.pop %v808
    %v811 = vmul.f32 %v800, %v809
    %v812 = vmul.f32 %v802, %v810
    %813 = vrot.lane.b32.xlu0 %v728, 64
    %v814 = vpop.permute.xlu0 %813
    %v817 = vsel %vm234, %v811, 0
    %819 = vmatpush.msra.mxu0 0.0
    %820 = vmatpush.msra.mxu0 0.0
    %821 = vmatpush.msra.mxu0 0.0
    %822 = vmatpush.msra.mxu0 0.0
    %823 = vmatpush.msra.mxu0 0.0
    %824 = vmatpush.msra.mxu0 0.0
    %825 = vmatpush.msra.mxu0 0.0
    %826 = vmatpush.msra.mxu0 0.0
    %827 = vmatpush.msra.mxu0 0.0
    %828 = vmatpush.msra.mxu0 0.0
    %829 = vmatpush.msra.mxu0 0.0
    %830 = vmatpush.msra.mxu0 0.0
    %831 = vmatpush.msra.mxu0 0.0
    %832 = vmatpush.msra.mxu0 0.0
    %833 = vmatpush.msra.mxu0 0.0
    %834 = vmatpush.msra.mxu0 %v814
    %835 = vmatmul.f32.gmra.mxu0 %v817
    %v836 = vpop.f32.mrf.mxu0
    %v837 = vadd.f32 0.0, %v836
    %838 = vdwg.mxu0
    %839 = vrot.lane.b32.xlu0 %v731, 64
    %v840 = vpop.permute.xlu0 %839
    %v843 = vsel %vm234, %v812, 0
    %845 = vmatpush.msra.mxu0 0.0
    %846 = vmatpush.msra.mxu0 0.0
    %847 = vmatpush.msra.mxu0 0.0
    %848 = vmatpush.msra.mxu0 0.0
    %849 = vmatpush.msra.mxu0 0.0
    %850 = vmatpush.msra.mxu0 0.0
    %851 = vmatpush.msra.mxu0 0.0
    %852 = vmatpush.msra.mxu0 0.0
    %853 = vmatpush.msra.mxu0 0.0
    %854 = vmatpush.msra.mxu0 0.0
    %855 = vmatpush.msra.mxu0 0.0
    %856 = vmatpush.msra.mxu0 0.0
    %857 = vmatpush.msra.mxu0 0.0
    %858 = vmatpush.msra.mxu0 0.0
    %859 = vmatpush.msra.mxu0 0.0
    %860 = vmatpush.msra.mxu0 %v840
    %861 = vmatmul.f32.gmra.mxu0 %v843
    %v862 = vpop.f32.mrf.mxu0
    %v863 = vadd.f32 0.0, %v862
    %864 = vdwg.mxu0
    %865 = vst.msk [vmem:[#allocation2] sm:$0xff] %vm178, %v837
    %866 = vst.msk [vmem:[#allocation2 + $0x8] sm:$0xff] %vm178, %v863
    %867 = vrot.lane.b32.xlu0 %v728, 112
    %v868 = vpop.permute.xlu0 %867
    %869 = vrot.lane.b32.xlu0 %v728, 80
    %v870 = vpop.permute.xlu0 %869
    %v871 = vsel %vm178, %v868, 0
    %v873 = vsel %vm178, %v870, 0
    %875 = vmatpush.xpose.msra.mxu0 0.0
    %876 = vmatpush.xpose.msra.mxu0 0.0
    %877 = vmatpush.xpose.msra.mxu0 0.0
    %878 = vmatpush.xpose.msra.mxu0 0.0
    %879 = vmatpush.xpose.msra.mxu0 0.0
    %880 = vmatpush.xpose.msra.mxu0 0.0
    %881 = vmatpush.xpose.msra.mxu0 0.0
    %882 = vmatpush.xpose.msra.mxu0 0.0
    %883 = vmatpush.xpose.msra.mxu0 0.0
    %884 = vmatpush.xpose.msra.mxu0 0.0
    %885 = vmatpush.xpose.msra.mxu0 0.0
    %886 = vmatpush.xpose.msra.mxu0 0.0
    %887 = vmatpush.xpose.msra.mxu0 0.0
    %888 = vmatpush.xpose.msra.mxu0 0.0
    %889 = vmatpush.xpose.msra.mxu0 0.0
    %890 = vmatpush.xpose.msra.mxu0 %v873
    %891 = vmatmul.f32.gmra.mxu0 %v871
    %v892 = vpop.f32.mrf.mxu0
    %v893 = vadd.f32 0.0, %v892
    %894 = vdwg.mxu0
    %895 = vrot.lane.b32.xlu0 %v731, 112
    %v896 = vpop.permute.xlu0 %895
    %897 = vrot.lane.b32.xlu0 %v731, 80
    %v898 = vpop.permute.xlu0 %897
    %v899 = vsel %vm178, %v896, 0
    %v901 = vsel %vm178, %v898, 0
    %903 = vmatpush.xpose.msra.mxu0 0.0
    %904 = vmatpush.xpose.msra.mxu0 0.0
    %905 = vmatpush.xpose.msra.mxu0 0.0
    %906 = vmatpush.xpose.msra.mxu0 0.0
    %907 = vmatpush.xpose.msra.mxu0 0.0
    %908 = vmatpush.xpose.msra.mxu0 0.0
    %909 = vmatpush.xpose.msra.mxu0 0.0
    %910 = vmatpush.xpose.msra.mxu0 0.0
    %911 = vmatpush.xpose.msra.mxu0 0.0
    %912 = vmatpush.xpose.msra.mxu0 0.0
    %913 = vmatpush.xpose.msra.mxu0 0.0
    %914 = vmatpush.xpose.msra.mxu0 0.0
    %915 = vmatpush.xpose.msra.mxu0 0.0
    %916 = vmatpush.xpose.msra.mxu0 0.0
    %917 = vmatpush.xpose.msra.mxu0 0.0
    %918 = vmatpush.xpose.msra.mxu0 %v901
    %919 = vmatmul.f32.gmra.mxu0 %v899
    %v920 = vpop.f32.mrf.mxu0
    %v921 = vadd.f32 0.0, %v920
    %922 = vdwg.mxu0
    %v923 = vmul.f32 %v893, 0.25
    %v924 = vmul.f32 %v921, 0.25
    %v925 = vadd.f32 %v923, %v136
    %v926 = vadd.f32 %v924, %v137
    %v927 = vsel %vm234, %v925, -inf
    %928 = vmax.xlane.f32.xlu0 %v927
    %v929 = vpop.xlane.xlu0 %928
    %v930 = vsel %vm234, %v926, -inf
    %931 = vmax.xlane.f32.xlu0 %v930
    %v932 = vpop.xlane.xlu0 %931
    %v933 = vsub.f32 %v925, %v929
    %v934 = vsub.f32 %v926, %v932
    %v935 = vmul.f32 %v933, 1.442695
    %v936 = vpow.pop %v935
    %v937 = vmul.f32 %v934, 1.442695
    %v938 = vpow.pop %v937
    %v939 = vsel %vm234, %v936, 0.0
    %940 = vadd.xlane.f32.xlu0 %v939
    %v941 = vpop.xlane.xlu0 %940
    %v942 = vsel %vm234, %v938, 0.0
    %943 = vadd.xlane.f32.xlu0 %v942
    %v944 = vpop.xlane.xlu0 %943
    %v945 = vrcp.pop %v941
    %v946 = vrcp.pop %v944
    %v947 = vmul.f32 %v936, %v945
    %v948 = vmul.f32 %v938, %v946
    %949 = vrot.lane.b32.xlu0 %v728, 48
    %v950 = vpop.permute.xlu0 %949
    %v953 = vsel %vm234, %v947, 0
    %955 = vmatpush.msra.mxu0 0.0
    %956 = vmatpush.msra.mxu0 0.0
    %957 = vmatpush.msra.mxu0 0.0
    %958 = vmatpush.msra.mxu0 0.0
    %959 = vmatpush.msra.mxu0 0.0
    %960 = vmatpush.msra.mxu0 0.0
    %961 = vmatpush.msra.mxu0 0.0
    %962 = vmatpush.msra.mxu0 0.0
    %963 = vmatpush.msra.mxu0 0.0
    %964 = vmatpush.msra.mxu0 0.0
    %965 = vmatpush.msra.mxu0 0.0
    %966 = vmatpush.msra.mxu0 0.0
    %967 = vmatpush.msra.mxu0 0.0
    %968 = vmatpush.msra.mxu0 0.0
    %969 = vmatpush.msra.mxu0 0.0
    %970 = vmatpush.msra.mxu0 %v950
    %971 = vmatmul.f32.gmra.mxu0 %v953
    %v972 = vpop.f32.mrf.mxu0
    %v973 = vadd.f32 0.0, %v972
    %974 = vdwg.mxu0
    %975 = vrot.lane.b32.xlu0 %v731, 48
    %v976 = vpop.permute.xlu0 %975
    %v979 = vsel %vm234, %v948, 0
    %981 = vmatpush.msra.mxu0 0.0
    %982 = vmatpush.msra.mxu0 0.0
    %983 = vmatpush.msra.mxu0 0.0
    %984 = vmatpush.msra.mxu0 0.0
    %985 = vmatpush.msra.mxu0 0.0
    %986 = vmatpush.msra.mxu0 0.0
    %987 = vmatpush.msra.mxu0 0.0
    %988 = vmatpush.msra.mxu0 0.0
    %989 = vmatpush.msra.mxu0 0.0
    %990 = vmatpush.msra.mxu0 0.0
    %991 = vmatpush.msra.mxu0 0.0
    %992 = vmatpush.msra.mxu0 0.0
    %993 = vmatpush.msra.mxu0 0.0
    %994 = vmatpush.msra.mxu0 0.0
    %995 = vmatpush.msra.mxu0 0.0
    %996 = vmatpush.msra.mxu0 %v976
    %997 = vmatmul.f32.gmra.mxu0 %v979
    %v998 = vpop.f32.mrf.mxu0
    %v999 = vadd.f32 0.0, %v998
    %1000 = vdwg.mxu0
    %1003 = vrot.lane.b32.xlu0 %v973, 16
    %v1004 = vpop.permute.xlu0 %1003
    %1005 = vrot.lane.b32.xlu0 %v999, 16
    %v1006 = vpop.permute.xlu0 %1005
    %1009 = vst.msk [vmem:[#allocation2] sm:$0xff] %vm453, %v1004
    %1010 = vst.msk [vmem:[#allocation2 + $0x8] sm:$0xff] %vm453, %v1006
    %v1011 = vld [vmem:[#allocation2] sm:$0xff]
    %v1012 = vld [vmem:[#allocation2 + $0x8] sm:$0xff]
    %s1013 = scalar_lea.vmem %s6, 32
    %v1014 = vld [vmem:[%s1013] sm:$0xff]
    %v1015 = vld [vmem:[%s1013 + $0x8] sm:$0xff]
    %v1016 = vld [vmem:[%s1013 + $0x10] sm:$0xff]
    %v1017 = vld [vmem:[%s1013 + $0x18] sm:$0xff]
    %v1018 = vld [vmem:[%s7 + $0x1] sm:$0x1]
    %v1019 = vperm.slane %v1018, 0
    %v1021 = vsel %vm67, %v1011, 0
    %v1024 = vsel %vm67, %v1012, 0
    %1026 = vmatpush.msra.mxu0 0.0
    %1027 = vmatpush.msra.mxu0 0.0
    %1028 = vmatpush.msra.mxu0 0.0
    %1029 = vmatpush.msra.mxu0 0.0
    %1030 = vmatpush.msra.mxu0 0.0
    %1031 = vmatpush.msra.mxu0 0.0
    %1032 = vmatpush.msra.mxu0 0.0
    %1033 = vmatpush.msra.mxu0 0.0
    %1034 = vmatpush.msra.mxu0 0.0
    %1035 = vmatpush.msra.mxu0 0.0
    %1036 = vmatpush.msra.mxu0 0.0
    %1037 = vmatpush.msra.mxu0 0.0
    %1038 = vmatpush.msra.mxu0 %v1017
    %1039 = vmatpush.msra.mxu0 %v1016
    %1040 = vmatpush.msra.mxu0 %v1015
    %1041 = vmatpush.msra.mxu0 %v1014
    %1042 = vmatmul.f32.gmra.mxu0 %v1021
    %v1043 = vpop.f32.mrf.mxu0
    %v1044 = vadd.f32 %v1019, %v1043
    %1045 = vmatmul.f32.gmra.mxu0 %v1024
    %v1046 = vpop.f32.mrf.mxu0
    %v1047 = vadd.f32 %v1019, %v1046
    %1048 = vdwg.mxu0
    %v1049 = vadd.f32 %v692, %v1044
    %v1050 = vadd.f32 %v693, %v1047
    %v1051 = vld [vmem:[%s8 + $0x1] sm:$0x1]
    %v1052 = vld [vmem:[%s9 + $0x1] sm:$0x1]
    %v1053 = vsel %vm67, %v1049, 0.0
    %1054 = vadd.xlane.f32.xlu0 %v1053
    %v1055 = vpop.xlane.xlu0 %1054
    %v1056 = vsel %vm67, %v1050, 0.0
    %1057 = vadd.xlane.f32.xlu0 %v1056
    %v1058 = vpop.xlane.xlu0 %1057
    %v1059 = vmul.f32 %v1055, %v80
    %v1060 = vmul.f32 %v1058, %v80
    %v1061 = vsub.f32 %v1049, %v1059
    %v1062 = vsub.f32 %v1050, %v1060
    %v1063 = vmul.f32 %v1061, %v1061
    %v1064 = vmul.f32 %v1062, %v1062
    %v1065 = vsel %vm67, %v1063, 0.0
    %1066 = vadd.xlane.f32.xlu0 %v1065
    %v1067 = vpop.xlane.xlu0 %1066
    %v1068 = vsel %vm67, %v1064, 0.0
    %1069 = vadd.xlane.f32.xlu0 %v1068
    %v1070 = vpop.xlane.xlu0 %1069
    %v1071 = vmul.f32 %v1067, %v80
    %v1072 = vmul.f32 %v1070, %v80
    %v1073 = vadd.f32 %v1071, 1e-05
    %v1074 = vadd.f32 %v1072, 1e-05
    %v1075 = vrsqrt.pop %v1073
    %v1076 = vmul.f32 %v1075, %v1073
    %v1077 = vmul.f32 %v1076, %v1075
    %v1078 = vmul.f32 0.5, %v1077
    %v1079 = vsub.f32 1.5, %v1078
    %v1080 = vmul.f32 %v1075, %v1079
    %vm1081 = vweird.f32 %v1073
    %vm1082 = vweird.f32 %v1075
    %vm1083 = vmor %vm1081, %vm1082
    %v1084 = vsel %vm1083, %v1075, %v1080
    %v1085 = vrsqrt.pop %v1074
    %v1086 = vmul.f32 %v1085, %v1074
    %v1087 = vmul.f32 %v1086, %v1085
    %v1088 = vmul.f32 0.5, %v1087
    %v1089 = vsub.f32 1.5, %v1088
    %v1090 = vmul.f32 %v1085, %v1089
    %vm1091 = vweird.f32 %v1074
    %vm1092 = vweird.f32 %v1085
    %vm1093 = vmor %vm1091, %vm1092
    %v1094 = vsel %vm1093, %v1085, %v1090
    %v1095 = vmul.f32 %v1061, %v1084
    %v1096 = vmul.f32 %v1062, %v1094
    %v1097 = vperm.slane %v1051, 0
    %v1098 = vmul.f32 %v1095, %v1097
    %v1099 = vmul.f32 %v1096, %v1097
    %v1100 = vperm.slane %v1052, 0
    %v1101 = vadd.f32 %v1098, %v1100
    %v1102 = vadd.f32 %v1099, %v1100
    %s1103 = scalar_lea.vmem %s10, 32
    %v1104 = vld [vmem:[%s1103] sm:$0xff]
    %v1105 = vld [vmem:[%s1103 + $0x8] sm:$0xff]
    %v1106 = vld [vmem:[%s1103 + $0x10] sm:$0xff]
    %v1107 = vld [vmem:[%s1103 + $0x18] sm:$0xff]
    %v1108 = vld [vmem:[%s11 + $0x1] sm:$0x1]
    %v1109 = vperm.slane %v1108, 0
    %v1111 = vsel %vm67, %v1101, 0
    %v1114 = vsel %vm67, %v1102, 0
    %1116 = vmatpush.msra.mxu0 0.0
    %1117 = vmatpush.msra.mxu0 0.0
    %1118 = vmatpush.msra.mxu0 0.0
    %1119 = vmatpush.msra.mxu0 0.0
    %1120 = vmatpush.msra.mxu0 0.0
    %1121 = vmatpush.msra.mxu0 0.0
    %1122 = vmatpush.msra.mxu0 0.0
    %1123 = vmatpush.msra.mxu0 0.0
    %1124 = vmatpush.msra.mxu0 0.0
    %1125 = vmatpush.msra.mxu0 0.0
    %1126 = vmatpush.msra.mxu0 0.0
    %1127 = vmatpush.msra.mxu0 0.0
    %1128 = vmatpush.msra.mxu0 %v1107
    %1129 = vmatpush.msra.mxu0 %v1106
    %1130 = vmatpush.msra.mxu0 %v1105
    %1131 = vmatpush.msra.mxu0 %v1104
    %1132 = vmatmul.f32.gmra.mxu0 %v1111
    %v1133 = vpop.f32.mrf.mxu0
    %v1134 = vadd.f32 %v1109, %v1133
    %1135 = vmatmul.f32.gmra.mxu0 %v1114
    %v1136 = vpop.f32.mrf.mxu0
    %v1137 = vadd.f32 %v1109, %v1136
    %1138 = vdwg.mxu0
    %v1139 = vmul.f32 %v1134, 0.5
    %v1140 = vmul.f32 %v1137, 0.5
    %v1141 = vmul.f32 %v1134, 0.044715
    %v1142 = vmul.f32 %v1137, 0.044715
    %v1143 = vmul.f32 %v1141, %v1134
    %v1144 = vmul.f32 %v1142, %v1137
    %v1145 = vmul.f32 %v1143, %v1134
    %v1146 = vmul.f32 %v1144, %v1137
    %v1147 = vadd.f32 %v1134, %v1145
    %v1148 = vadd.f32 %v1137, %v1146
    %v1149 = vmul.f32 %v1147, 0.7978846
    %v1150 = vmul.f32 %v1148, 0.7978846
    %v1151 = vtanh.pop %v1149
    %v1152 = vtanh.pop %v1150
    %v1153 = vadd.f32 %v1151, 1.0
    %v1154 = vadd.f32 %v1152, 1.0
    %v1155 = vmul.f32 %v1139, %v1153
    %v1156 = vmul.f32 %v1140, %v1154
    %s1157 = scalar_lea.vmem %s12, 64
    %v1158 = vld [vmem:[%s1157] sm:$0xff]
    %v1159 = vld [vmem:[%s1157 + $0x8] sm:$0xff]
    %v1160 = vld [vmem:[%s1157 + $0x10] sm:$0xff]
    %v1161 = vld [vmem:[%s1157 + $0x18] sm:$0xff]
    %v1162 = vld [vmem:[%s1157 + $0x20] sm:$0xff]
    %v1163 = vld [vmem:[%s1157 + $0x28] sm:$0xff]
    %v1164 = vld [vmem:[%s1157 + $0x30] sm:$0xff]
    %v1165 = vld [vmem:[%s1157 + $0x38] sm:$0xff]
    %v1166 = vld [vmem:[%s13 + $0x1] sm:$0x1]
    %v1167 = vperm.slane %v1166, 0
    %v1169 = vsel %vm610, %v1155, 0
    %v1172 = vsel %vm610, %v1156, 0
    %1174 = vmatpush.msra.mxu0 0.0
    %1175 = vmatpush.msra.mxu0 0.0
    %1176 = vmatpush.msra.mxu0 0.0
    %1177 = vmatpush.msra.mxu0 0.0
    %1178 = vmatpush.msra.mxu0 0.0
    %1179 = vmatpush.msra.mxu0 0.0
    %1180 = vmatpush.msra.mxu0 0.0
    %1181 = vmatpush.msra.mxu0 0.0
    %1182 = vmatpush.msra.mxu0 %v1165
    %1183 = vmatpush.msra.mxu0 %v1164
    %1184 = vmatpush.msra.mxu0 %v1163
    %1185 = vmatpush.msra.mxu0 %v1162
    %1186 = vmatpush.msra.mxu0 %v1161
    %1187 = vmatpush.msra.mxu0 %v1160
    %1188 = vmatpush.msra.mxu0 %v1159
    %1189 = vmatpush.msra.mxu0 %v1158
    %1190 = vmatmul.f32.gmra.mxu0 %v1169
    %v1191 = vpop.f32.mrf.mxu0
    %v1192 = vadd.f32 %v1167, %v1191
    %1193 = vmatmul.f32.gmra.mxu0 %v1172
    %v1194 = vpop.f32.mrf.mxu0
    %v1195 = vadd.f32 %v1167, %v1194
    %1196 = vdwg.mxu0
    %v1197 = vadd.f32 %v1101, %v1192
    %v1198 = vadd.f32 %v1102, %v1195
    %v1199 = vld [vmem:[%s14 + $0x1] sm:$0x1]
    %v1200 = vld [vmem:[%s15 + $0x1] sm:$0x1]
    %v1201 = vsel %vm67, %v1197, 0.0
    %1202 = vadd.xlane.f32.xlu0 %v1201
    %v1203 = vpop.xlane.xlu0 %1202
    %v1204 = vsel %vm67, %v1198, 0.0
    %1205 = vadd.xlane.f32.xlu0 %v1204
    %v1206 = vpop.xlane.xlu0 %1205
    %v1207 = vmul.f32 %v1203, %v80
    %v1208 = vmul.f32 %v1206, %v80
    %v1209 = vsub.f32 %v1197, %v1207
    %v1210 = vsub.f32 %v1198, %v1208
    %v1211 = vmul.f32 %v1209, %v1209
    %v1212 = vmul.f32 %v1210, %v1210
    %v1213 = vsel %vm67, %v1211, 0.0
    %1214 = vadd.xlane.f32.xlu0 %v1213
    %v1215 = vpop.xlane.xlu0 %1214
    %v1216 = vsel %vm67, %v1212, 0.0
    %1217 = vadd.xlane.f32.xlu0 %v1216
    %v1218 = vpop.xlane.xlu0 %1217
    %v1219 = vmul.f32 %v1215, %v80
    %v1220 = vmul.f32 %v1218, %v80
    %v1221 = vadd.f32 %v1219, 1e-05
    %v1222 = vadd.f32 %v1220, 1e-05
    %v1223 = vrsqrt.pop %v1221
    %v1224 = vmul.f32 %v1223, %v1221
    %v1225 = vmul.f32 %v1224, %v1223
    %v1226 = vmul.f32 0.5, %v1225
    %v1227 = vsub.f32 1.5, %v1226
    %v1228 = vmul.f32 %v1223, %v1227
    %vm1229 = vweird.f32 %v1221
    %vm1230 = vweird.f32 %v1223
    %vm1231 = vmor %vm1229, %vm1230
    %v1232 = vsel %vm1231, %v1223, %v1228
    %v1233 = vrsqrt.pop %v1222
    %v1234 = vmul.f32 %v1233, %v1222
    %v1235 = vmul.f32 %v1234, %v1233
    %v1236 = vmul.f32 0.5, %v1235
    %v1237 = vsub.f32 1.5, %v1236
    %v1238 = vmul.f32 %v1233, %v1237
    %vm1239 = vweird.f32 %v1222
    %vm1240 = vweird.f32 %v1233
    %vm1241 = vmor %vm1239, %vm1240
    %v1242 = vsel %vm1241, %v1233, %v1238
    %v1243 = vmul.f32 %v1209, %v1232
    %v1244 = vmul.f32 %v1210, %v1242
    %v1245 = vperm.slane %v1199, 0
    %v1246 = vmul.f32 %v1243, %v1245
    %v1247 = vmul.f32 %v1244, %v1245
    %v1248 = vperm.slane %v1200, 0
    %v1249 = vadd.f32 %v1246, %v1248
    %v1250 = vadd.f32 %v1247, %v1248
    %s1251 = scalar_lea.vmem [#allocation3], 32
    %1252 = vst.msk [vmem:[%s1251] sm:$0xff] %vm67, %v1249
    %1253 = vst.msk [vmem:[%s1251 + $0x8] sm:$0xff] %vm67, %v1250
    %v1254 = vld [vmem:[%s17] sm:$0x1]
    %v1256 = vperm.slane %v1254, 0
    %v1258 = vadd.f32 %v1256, 0.0
    %v1259 = vld [vmem:[%s1251] sm:$0x1]
    %v1260 = vld [vmem:[%s1251 + $0x8] sm:$0x1]
    %v1261 = vld [vmem:[%s16] sm:$0xff]
    %v1262 = vld [vmem:[%s16 + $0x8] sm:$0xff]
    %v1263 = vld [vmem:[%s16 + $0x10] sm:$0xff]
    %v1264 = vld [vmem:[%s16 + $0x18] sm:$0xff]
    %v1267 = vrot.slane %v1260, 7
    %vm1268 = vcmask 1041409
    %v1269 = vsel %vm1268, %v1267, %v1259
    %v1270 = vsel %vm67, %v1269, 0
    %1272 = vmatpush.msra.mxu0 0.0
    %1273 = vmatpush.msra.mxu0 0.0
    %1274 = vmatpush.msra.mxu0 0.0
    %1275 = vmatpush.msra.mxu0 0.0
    %1276 = vmatpush.msra.mxu0 0.0
    %1277 = vmatpush.msra.mxu0 0.0
    %1278 = vmatpush.msra.mxu0 0.0
    %1279 = vmatpush.msra.mxu0 0.0
    %1280 = vmatpush.msra.mxu0 0.0
    %1281 = vmatpush.msra.mxu0 0.0
    %1282 = vmatpush.msra.mxu0 0.0
    %1283 = vmatpush.msra.mxu0 0.0
    %1284 = vmatpush.msra.mxu0 %v1264
    %1285 = vmatpush.msra.mxu0 %v1263
    %1286 = vmatpush.msra.mxu0 %v1262
    %1287 = vmatpush.msra.mxu0 %v1261
    %1288 = vmatmul.f32.gmra.mxu0 %v1270
    %v1289 = vpop.f32.mrf.mxu0
    %v1290 = vadd.f32 0.0, %v1289
    %1291 = vdwg.mxu0
    %v1292 = vadd.f32 %v1258, %v1290
    %v1293 = vld [vmem:[%s1251 + $0x1] sm:$0x1]
    %v1294 = vld [vmem:[%s1251 + $0x9] sm:$0x1]
    %s1295 = scalar_lea.vmem %s16, 32
    %v1296 = vld [vmem:[%s1295] sm:$0xff]
    %v1297 = vld [vmem:[%s1295 + $0x8] sm:$0xff]
    %v1298 = vld [vmem:[%s1295 + $0x10] sm:$0xff]
    %v1299 = vld [vmem:[%s1295 + $0x18] sm:$0xff]
    %v1302 = vrot.slane %v1294, 7
    %v1303 = vsel %vm1268, %v1302, %v1293
    %v1304 = vsel %vm67, %v1303, 0
    %1306 = vmatpush.msra.mxu0 0.0
    %1307 = vmatpush.msra.mxu0 0.0
    %1308 = vmatpush.msra.mxu0 0.0
    %1309 = vmatpush.msra.mxu0 0.0
    %1310 = vmatpush.msra.mxu0 0.0
    %1311 = vmatpush.msra.mxu0 0.0
    %1312 = vmatpush.msra.mxu0 0.0
    %1313 = vmatpush.msra.mxu0 0.0
    %1314 = vmatpush.msra.mxu0 0.0
    %1315 = vmatpush.msra.mxu0 0.0
    %1316 = vmatpush.msra.mxu0 0.0
    %1317 = vmatpush.msra.mxu0 0.0
    %1318 = vmatpush.msra.mxu0 %v1299
    %1319 = vmatpush.msra.mxu0 %v1298
    %1320 = vmatpush.msra.mxu0 %v1297
    %1321 = vmatpush.msra.mxu0 %v1296
    %1322 = vmatmul.f32.gmra.mxu0 %v1304
    %v1323 = vpop.f32.mrf.mxu0
    %v1324 = vadd.f32 0.0, %v1323
    %1325 = vdwg.mxu0
    %v1326 = vadd.f32 %v1292, %v1324
    %v1327 = vld [vmem:[%s1251 + $0x2] sm:$0x1]
    %v1328 = vld [vmem:[%s1251 + $0xa] sm:$0x1]
    %s1329 = scalar_lea.vmem %s16, 64
    %v1330 = vld [vmem:[%s1329] sm:$0xff]
    %v1331 = vld [vmem:[%s1329 + $0x8] sm:$0xff]
    %v1332 = vld [vmem:[%s1329 + $0x10] sm:$0xff]
    %v1333 = vld [vmem:[%s1329 + $0x18] sm:$0xff]
    %v1336 = vrot.slane %v1328, 7
    %v1337 = vsel %vm1268, %v1336, %v1327
    %v1338 = vsel %vm67, %v1337, 0
    %1340 = vmatpush.msra.mxu0 0.0
    %1341 = vmatpush.msra.mxu0 0.0
    %1342 = vmatpush.msra.mxu0 0.0
    %1343 = vmatpush.msra.mxu0 0.0
    %1344 = vmatpush.msra.mxu0 0.0
    %1345 = vmatpush.msra.mxu0 0.0
    %1346 = vmatpush.msra.mxu0 0.0
    %1347 = vmatpush.msra.mxu0 0.0
    %1348 = vmatpush.msra.mxu0 0.0
    %1349 = vmatpush.msra.mxu0 0.0
    %1350 = vmatpush.msra.mxu0 0.0
    %1351 = vmatpush.msra.mxu0 0.0
    %1352 = vmatpush.msra.mxu0 %v1333
    %1353 = vmatpush.msra.mxu0 %v1332
    %1354 = vmatpush.msra.mxu0 %v1331
    %1355 = vmatpush.msra.mxu0 %v1330
    %1356 = vmatmul.f32.gmra.mxu0 %v1338
    %v1357 = vpop.f32.mrf.mxu0
    %v1358 = vadd.f32 0.0, %v1357
    %1359 = vdwg.mxu0
    %v1360 = vadd.f32 %v1326, %v1358
    %v1361 = vld [vmem:[%s1251 + $0x3] sm:$0x1]
    %v1362 = vld [vmem:[%s1251 + $0xb] sm:$0x1]
    %s1363 = scalar_lea.vmem %s16, 96
    %v1364 = vld [vmem:[%s1363] sm:$0xff]
    %v1365 = vld [vmem:[%s1363 + $0x8] sm:$0xff]
    %v1366 = vld [vmem:[%s1363 + $0x10] sm:$0xff]
    %v1367 = vld [vmem:[%s1363 + $0x18] sm:$0xff]
    %v1370 = vrot.slane %v1362, 7
    %v1371 = vsel %vm1268, %v1370, %v1361
    %v1372 = vsel %vm67, %v1371, 0
    %1374 = vmatpush.msra.mxu0 0.0
    %1375 = vmatpush.msra.mxu0 0.0
    %1376 = vmatpush.msra.mxu0 0.0
    %1377 = vmatpush.msra.mxu0 0.0
    %1378 = vmatpush.msra.mxu0 0.0
    %1379 = vmatpush.msra.mxu0 0.0
    %1380 = vmatpush.msra.mxu0 0.0
    %1381 = vmatpush.msra.mxu0 0.0
    %1382 = vmatpush.msra.mxu0 0.0
    %1383 = vmatpush.msra.mxu0 0.0
    %1384 = vmatpush.msra.mxu0 0.0
    %1385 = vmatpush.msra.mxu0 0.0
    %1386 = vmatpush.msra.mxu0 %v1367
    %1387 = vmatpush.msra.mxu0 %v1366
    %1388 = vmatpush.msra.mxu0 %v1365
    %1389 = vmatpush.msra.mxu0 %v1364
    %1390 = vmatmul.f32.gmra.mxu0 %v1372
    %v1391 = vpop.f32.mrf.mxu0
    %v1392 = vadd.f32 0.0, %v1391
    %1393 = vdwg.mxu0
    %v1394 = vadd.f32 %v1360, %v1392
    %v1395 = vld [vmem:[%s1251 + $0x4] sm:$0x1]
    %v1396 = vld [vmem:[%s1251 + $0xc] sm:$0x1]
    %s1397 = scalar_lea.vmem %s16, 128
    %v1398 = vld [vmem:[%s1397] sm:$0xff]
    %v1399 = vld [vmem:[%s1397 + $0x8] sm:$0xff]
    %v1400 = vld [vmem:[%s1397 + $0x10] sm:$0xff]
    %v1401 = vld [vmem:[%s1397 + $0x18] sm:$0xff]
    %v1404 = vrot.slane %v1396, 7
    %v1405 = vsel %vm1268, %v1404, %v1395
    %v1406 = vsel %vm67, %v1405, 0
    %1408 = vmatpush.msra.mxu0 0.0
    %1409 = vmatpush.msra.mxu0 0.0
    %1410 = vmatpush.msra.mxu0 0.0
    %1411 = vmatpush.msra.mxu0 0.0
    %1412 = vmatpush.msra.mxu0 0.0
    %1413 = vmatpush.msra.mxu0 0.0
    %1414 = vmatpush.msra.mxu0 0.0
    %1415 = vmatpush.msra.mxu0 0.0
    %1416 = vmatpush.msra.mxu0 0.0
    %1417 = vmatpush.msra.mxu0 0.0
    %1418 = vmatpush.msra.mxu0 0.0
    %1419 = vmatpush.msra.mxu0 0.0
    %1420 = vmatpush.msra.mxu0 %v1401
    %1421 = vmatpush.msra.mxu0 %v1400
    %1422 = vmatpush.msra.mxu0 %v1399
    %1423 = vmatpush.msra.mxu0 %v1398
    %1424 = vmatmul.f32.gmra.mxu0 %v1406
    %v1425 = vpop.f32.mrf.mxu0
    %v1426 = vadd.f32 0.0, %v1425
    %1427 = vdwg.mxu0
    %v1428 = vadd.f32 %v1394, %v1426
    %v1429 = vld [vmem:[%s1251 + $0x5] sm:$0x1]
    %v1430 = vld [vmem:[%s1251 + $0xd] sm:$0x1]
    %s1431 = scalar_lea.vmem %s16, 160
    %v1432 = vld [vmem:[%s1431] sm:$0xff]
    %v1433 = vld [vmem:[%s1431 + $0x8] sm:$0xff]
    %v1434 = vld [vmem:[%s1431 + $0x10] sm:$0xff]
    %v1435 = vld [vmem:[%s1431 + $0x18] sm:$0xff]
    %v1438 = vrot.slane %v1430, 7
    %v1439 = vsel %vm1268, %v1438, %v1429
    %v1440 = vsel %vm67, %v1439, 0
    %1442 = vmatpush.msra.mxu0 0.0
    %1443 = vmatpush.msra.mxu0 0.0
    %1444 = vmatpush.msra.mxu0 0.0
    %1445 = vmatpush.msra.mxu0 0.0
    %1446 = vmatpush.msra.mxu0 0.0
    %1447 = vmatpush.msra.mxu0 0.0
    %1448 = vmatpush.msra.mxu0 0.0
    %1449 = vmatpush.msra.mxu0 0.0
    %1450 = vmatpush.msra.mxu0 0.0
    %1451 = vmatpush.msra.mxu0 0.0
    %1452 = vmatpush.msra.mxu0 0.0
    %1453 = vmatpush.msra.mxu0 0.0
    %1454 = vmatpush.msra.mxu0 %v1435
    %1455 = vmatpush.msra.mxu0 %v1434
    %1456 = vmatpush.msra.mxu0 %v1433
    %1457 = vmatpush.msra.mxu0 %v1432
    %1458 = vmatmul.f32.gmra.mxu0 %v1440
    %v1459 = vpop.f32.mrf.mxu0
    %v1460 = vadd.f32 0.0, %v1459
    %1461 = vdwg.mxu0
    %v1462 = vadd.f32 %v1428, %v1460
    %v1463 = vld [vmem:[%s1251 + $0x6] sm:$0x1]
    %v1464 = vld [vmem:[%s1251 + $0xe] sm:$0x1]
    %s1465 = scalar_lea.vmem %s16, 192
    %v1466 = vld [vmem:[%s1465] sm:$0xff]
    %v1467 = vld [vmem:[%s1465 + $0x8] sm:$0xff]
    %v1468 = vld [vmem:[%s1465 + $0x10] sm:$0xff]
    %v1469 = vld [vmem:[%s1465 + $0x18] sm:$0xff]
    %v1472 = vrot.slane %v1464, 7
    %v1473 = vsel %vm1268, %v1472, %v1463
    %v1474 = vsel %vm67, %v1473, 0
    %1476 = vmatpush.msra.mxu0 0.0
    %1477 = vmatpush.msra.mxu0 0.0
    %1478 = vmatpush.msra.mxu0 0.0
    %1479 = vmatpush.msra.mxu0 0.0
    %1480 = vmatpush.msra.mxu0 0.0
    %1481 = vmatpush.msra.mxu0 0.0
    %1482 = vmatpush.msra.mxu0 0.0
    %1483 = vmatpush.msra.mxu0 0.0
    %1484 = vmatpush.msra.mxu0 0.0
    %1485 = vmatpush.msra.mxu0 0.0
    %1486 = vmatpush.msra.mxu0 0.0
    %1487 = vmatpush.msra.mxu0 0.0
    %1488 = vmatpush.msra.mxu0 %v1469
    %1489 = vmatpush.msra.mxu0 %v1468
    %1490 = vmatpush.msra.mxu0 %v1467
    %1491 = vmatpush.msra.mxu0 %v1466
    %1492 = vmatmul.f32.gmra.mxu0 %v1474
    %v1493 = vpop.f32.mrf.mxu0
    %v1494 = vadd.f32 0.0, %v1493
    %1495 = vdwg.mxu0
    %v1496 = vadd.f32 %v1462, %v1494
    %v1497 = vld [vmem:[%s1251 + $0x7] sm:$0x1]
    %v1498 = vld [vmem:[%s1251 + $0xf] sm:$0x1]
    %s1499 = scalar_lea.vmem %s16, 224
    %v1500 = vld [vmem:[%s1499] sm:$0xff]
    %v1501 = vld [vmem:[%s1499 + $0x8] sm:$0xff]
    %v1502 = vld [vmem:[%s1499 + $0x10] sm:$0xff]
    %v1503 = vld [vmem:[%s1499 + $0x18] sm:$0xff]
    %v1506 = vrot.slane %v1498, 7
    %v1507 = vsel %vm1268, %v1506, %v1497
    %v1508 = vsel %vm67, %v1507, 0
    %1510 = vmatpush.msra.mxu0 0.0
    %1511 = vmatpush.msra.mxu0 0.0
    %1512 = vmatpush.msra.mxu0 0.0
    %1513 = vmatpush.msra.mxu0 0.0
    %1514 = vmatpush.msra.mxu0 0.0
    %1515 = vmatpush.msra.mxu0 0.0
    %1516 = vmatpush.msra.mxu0 0.0
    %1517 = vmatpush.msra.mxu0 0.0
    %1518 = vmatpush.msra.mxu0 0.0
    %1519 = vmatpush.msra.mxu0 0.0
    %1520 = vmatpush.msra.mxu0 0.0
    %1521 = vmatpush.msra.mxu0 0.0
    %1522 = vmatpush.msra.mxu0 %v1503
    %1523 = vmatpush.msra.mxu0 %v1502
    %1524 = vmatpush.msra.mxu0 %v1501
    %1525 = vmatpush.msra.mxu0 %v1500
    %1526 = vmatmul.f32.gmra.mxu0 %v1508
    %v1527 = vpop.f32.mrf.mxu0
    %v1528 = vadd.f32 0.0, %v1527
    %1529 = vdwg.mxu0
    %v1530 = vadd.f32 %v1496, %v1528
    %vm1531 = vcmask 25600
    %1532 = vst.msk [vmem:[#allocation5] sm:$0x3] %vm1531, %v1530
    // Predicated region
    $region74: #{tpu_custom_call.1} parent=1 // pred_check
      _
    $region75: #{tpu_custom_call.1} parent=1 // pred_check_branch
      %1534 = sbr.rel (0) target = $region77
    $region76: #{tpu_custom_call.1} parent=1 // pred_region
      %1536 = vsyncadd [#allocation4], 0
      %s1537 = sshll.u32 [#allocation3], 4
      %s1538 = int_to_ptr.vmem [resolvable:$true] %s1537
      %s1539 = sshll.u32 %s18, 4
      %s1540 = int_to_ptr.hbm [resolvable:$true] %s1539
      %1545 = dma.vmem_to_hbm [thread:$0]  %s1538, 768, %s1540, [#allocation4], 128, 128, 8
    $region77: #{tpu_custom_call.1} parent=1 // pred_fallthru
      _
    // Predicated region
    $region78: #{tpu_custom_call.1} parent=1 // pred_check
      _
    $region79: #{tpu_custom_call.1} parent=1 // pred_check_branch
      %1547 = sbr.rel (0) target = $region81
    $region80: #{tpu_custom_call.1} parent=1 // pred_region
      %1549 = vsyncadd [#allocation6], 0
      %s1551 = sshll.u32 [#allocation5], 4
      %s1552 = int_to_ptr.vmem [resolvable:$true] %s1551
      %s1553 = sshll.u32 %s19, 4
      %s1554 = int_to_ptr.hbm [resolvable:$true] %s1553
      %1556 = dma.vmem_to_hbm [thread:$0]  %s1552, 32, %s1554, [#allocation6]
    $region81: #{tpu_custom_call.1} parent=1 // pred_fallthru
      _
    // Predicated region
    $region82: #{tpu_custom_call.1} parent=1 // pred_check
      _
    $region83: #{tpu_custom_call.1} parent=1 // pred_check_branch
      %1558 = sbr.rel (0) target = $region85
    $region84: #{tpu_custom_call.1} parent=1 // pred_region
      %1560 = dma.done [#allocation4], 768
    $region85: #{tpu_custom_call.1} parent=1 // pred_fallthru
      _
    // Predicated region
    $region86: #{tpu_custom_call.1} parent=1 // pred_check
      _
    $region87: #{tpu_custom_call.1} parent=1 // pred_check_branch
      %1562 = sbr.rel (0) target = $region89
    $region88: #{tpu_custom_call.1} parent=1 // pred_region
      %1564 = dma.done [#allocation6], 32
    $region89: #{tpu_custom_call.1} parent=1 // pred_fallthru
      _
    %1565 = vsyncpa [#allocation4], 1
    %1566 = vsyncpa [#allocation6], 1

</llo_original>
